<compile_context>
chip_gen: v6e
topology: v6e:2x2x1
jax: 0.10.0
libtpu: 0.0.40
codegen_flags: <defaults>
</compile_context>

<pallas_src>
import math

import numpy as np
import jax
import jax.numpy as jnp
from jax.experimental import pallas as pl
from jax.experimental.pallas import tpu as pltpu


def _make_kernel(L, H, E, hd, N, BB, C_pad, eps=1e-5):
    M = BB * N
    c_gelu = math.sqrt(2.0 / math.pi)
    f32 = jnp.float32
    bf16 = jnp.bfloat16

    def layernorm(v, g, b):
        mu = jnp.mean(v, axis=-1, keepdims=True)
        var = jnp.mean(jnp.square(v - mu), axis=-1, keepdims=True)
        return (v - mu) * jax.lax.rsqrt(var + eps) * g + b

    def kernel(seq_ref, tgt_ref, we_ref, posb_ref, wqkv_ref, bqkv_ref, apw_ref,
               plv_ref, misc_ref, fcw_ref, fcb_ref, fpw_ref, wr_ref, br_ref, out_ref):
        D1 = seq_ref.shape[-1]
        we = we_ref[...]                                    # (D1, E) bf16

        # Embedding of the (x, y) context sequences + learned positional embedding.
        x = seq_ref[...].reshape(M, D1)                     # (M, D1) f32
        emb = jnp.dot(x.astype(bf16), we, preferred_element_type=f32)       # (M, E)
        h = (emb.reshape(BB, N, E) + posb_ref[...][None]).reshape(M, E)

        # Additive causal mask (computed once, shared by every layer / head / batch).
        row = jax.lax.broadcasted_iota(jnp.int32, (N, N), 0)
        col = jax.lax.broadcasted_iota(jnp.int32, (N, N), 1)
        mask_bias = jnp.where(col <= row, 0.0, -1e9).astype(f32)            # (N, N)

        for l in range(L):
            plv = plv_ref[l]                                # (6, E) f32
            g1, b1 = plv[0:1], plv[1:2]
            g2, b2 = plv[2:3], plv[3:4]
            apb, fpb = plv[4:5], plv[5:6]

            # --- attention block: fused QKV matmul, heads batched through one softmax
            #     chain, one fused output projection ---
            hn = layernorm(h, g1, b1).astype(bf16)          # (M, E)
            qkv = jnp.dot(hn, wqkv_ref[l], preferred_element_type=f32) + bqkv_ref[l]

            def split_heads(start):                         # (M, 3E) slab -> (H*BB, N, hd)
                return jnp.concatenate(
                    [qkv[:, start + hh * hd:start + (hh + 1) * hd].reshape(BB, N, hd)
                     for hh in range(H)], axis=0)

            qh = split_heads(0).astype(bf16)                # 1/sqrt(hd) folded into weights
            kh = split_heads(E).astype(bf16)
            vh = split_heads(2 * E).astype(bf16)

            s = jnp.einsum("bqd,bkd->bqk", qh, kh,
                           preferred_element_type=f32)      # (H*BB, N, N)
            s = s + mask_bias[None]
            mmax = jnp.max(s, axis=-1, keepdims=True)       # row-max BEFORE exp (mask-safe)
            p = jnp.exp(s - mmax)
            denom = jnp.sum(p, axis=-1, keepdims=True)
            p = (p * pl.reciprocal(denom, approx=True)).astype(bf16)
            o = jnp.einsum("bqk,bkd->bqd", p, vh,
                           preferred_element_type=f32)      # (H*BB, N, hd)

            # Re-assemble head contexts head-major along lanes, one output projection.
            ctx = jnp.concatenate(
                [o[hh * BB:(hh + 1) * BB].reshape(M, hd) for hh in range(H)],
                axis=-1)                                    # (M, E)
            attn = jnp.dot(ctx.astype(bf16), apw_ref[l], preferred_element_type=f32)
            # TODO(synk): carry h/attn in bf16 on v6e/v7x; kept f32 so v5e (no bf16 VPU) is safe.
            h = h + attn + apb

            # --- MLP block (gelu_new / tanh approximation, as in GPT-2) ---
            hn2 = layernorm(h, g2, b2).astype(bf16)
            fc = jnp.dot(hn2, fcw_ref[l], preferred_element_type=f32) + fcb_ref[l]
            act = 0.5 * fc * (1.0 + jnp.tanh(c_gelu * (fc + 0.044715 * fc * fc * fc)))
            h = h + jnp.dot(act.astype(bf16), fpw_ref[l],
                            preferred_element_type=f32) + fpb

        # Final LN, mean pool over the context, add target embedding, read out.
        misc = misc_ref[...]                                # (3, E): lnf_g, lnf_b, b_embed
        hf = layernorm(h, misc[0:1], misc[1:2])
        pooled = jnp.mean(hf.reshape(BB, N, E), axis=1)     # (BB, E)
        tx = tgt_ref[...].reshape(BB, D1)
        temb = jnp.dot(tx.astype(bf16), we, preferred_element_type=f32) + misc[2:3]
        combined = (pooled + temb).astype(bf16)
        logits = jnp.dot(combined, wr_ref[...], preferred_element_type=f32) + br_ref[...]
        out_ref[0] = logits                                 # (BB, C_pad) lane-dense store

    return kernel


def _choose_batch_block(B, N, target_rows=256):
    """Pick BB so one grid step presents M = BB*N ~ target_rows rows to the MXU,
    keeping >= 2 grid steps when the batch allows it (v7x: one per TensorCore)."""
    bb = max(1, target_rows // max(N, 1))
    if B <= bb:
        bb = B                        # small batch: a single step holds everything
    elif B < 2 * bb:
        bb = -(-B // 2)               # keep two grid steps
    nb = -(-B // bb)
    return bb, nb


def im_context_transformer_forward(params, context_x, context_y, target_x,
                                   target_rows=256):
    B, N, D = context_x.shape
    D1 = D + 1
    E = params["w_embed"].shape[1]
    L = params["ln1_g"].shape[0]
    H = int(params["n_head"])
    hd = E // H
    assert H * hd == E
    C = params["w_read"].shape[1]
    C_pad = 128 * ((C + 127) // 128)

    BB, nb = _choose_batch_block(B, N, target_rows)
    B_pad = BB * nb

    f32, bf16 = jnp.float32, jnp.bfloat16

    # Glue: build the (x, y) context sequences and zero-padded target (as in PyTorch).
    seq = jnp.concatenate([context_x, context_y[..., None].astype(f32)], axis=-1)
    tgt = jnp.concatenate([target_x, jnp.zeros_like(target_x[..., :1])], axis=-1)
    if B_pad != B:   # pad batch to a multiple of the batch block; sliced off at the end
        seq = jnp.pad(seq, ((0, B_pad - B), (0, 0), (0, 0)))
        tgt = jnp.pad(tgt, ((0, B_pad - B), (0, 0), (0, 0)))

    # --- weight packing / re-layout (done once in the wrapper) ---
    we = params["w_embed"].astype(bf16)                                   # (D1, E)
    posb = (params["wpe"][:N] + params["b_embed"]).astype(f32)            # (N, E)
    # Fold 1/sqrt(head_dim) into the Q columns of the fused QKV weight/bias.
    q_scale = jnp.concatenate([jnp.full((E,), 1.0 / math.sqrt(hd), dtype=f32),
                               jnp.ones((2 * E,), dtype=f32)])
    wqkv = (params["attn_w"] * q_scale[None, None, :]).astype(bf16)       # (L, E, 3E)
    bqkv = (params["attn_b"] * q_scale[None, None, :]).astype(f32)        # (L, 1, 3E)
    apw = params["attn_proj_w"].astype(bf16)                              # (L, E, E)
    plv = jnp.concatenate([params["ln1_g"], params["ln1_b"],
                           params["ln2_g"], params["ln2_b"],
                           params["attn_proj_b"], params["fc_proj_b"]], axis=1).astype(f32)
    misc = jnp.concatenate([params["lnf_g"], params["lnf_b"], params["b_embed"]],
                           axis=0).astype(f32)                            # (3, E)
    fcw = params["fc_w"].astype(bf16)
    fcb = params["fc_b"].astype(f32)
    fpw = params["fc_proj_w"].astype(bf16)
    wr = jnp.pad(params["w_read"], ((0, 0), (0, C_pad - C))).astype(bf16)  # lane-dense
    br = jnp.pad(params["b_read"], ((0, 0), (0, C_pad - C))).astype(f32)

    weights = [we, posb, wqkv, bqkv, apw, plv, misc, fcw, fcb, fpw, wr, br]

    kernel = _make_kernel(L, H, E, hd, N, BB, C_pad)

    def fixed(a):
        nd = a.ndim
        # TODO(synk): pipeline_mode=pl.Buffered(1) would single-buffer these invariant
        # slabs; skipped here since they are tiny at this model size.
        return pl.BlockSpec(a.shape, lambda b, _nd=nd: (0,) * _nd)

    in_specs = [
        pl.BlockSpec((BB, N, D1), lambda b: (b, 0, 0)),
        pl.BlockSpec((BB, 1, D1), lambda b: (b, 0, 0)),
    ] + [fixed(w) for w in weights]

    # Advisory cost estimate so XLA can overlap this small call with surrounding ops.
    flops = (2 * B_pad * N * D1 * E + 2 * B_pad * D1 * E + 2 * B_pad * E * C_pad
             + L * B_pad * N * (6 * E * E + 4 * N * E + 2 * E * E + 16 * E * E))
    transcendentals = (L * B_pad * (H * N * N + 4 * N * E)
                       + (2 * L + 1) * B_pad * N + L * B_pad * H * N)
    bytes_accessed = int(sum(int(a.size) * a.dtype.itemsize for a in [seq, tgt] + weights)
                         + nb * BB * C_pad * 4)
    ce = pl.CostEstimate(flops=int(flops), transcendentals=int(transcendentals),
                         bytes_accessed=bytes_accessed)

    out = pl.pallas_call(
        kernel,
        out_shape=jax.ShapeDtypeStruct((nb, BB, C_pad), f32),
        grid_spec=pltpu.PrefetchScalarGridSpec(
            num_scalar_prefetch=0,
            grid=(nb,),
            in_specs=in_specs,
            out_specs=pl.BlockSpec((1, BB, C_pad), lambda b: (b, 0, 0)),
        ),
        compiler_params=pltpu.CompilerParams(dimension_semantics=("parallel",)),
        cost_estimate=ce,
    )(seq, tgt, *weights)
    return out.reshape(B_pad, C_pad)[:B, :C]


def init_params(key, n_dims, n_positions, n_classes, n_embd=32, n_layer=2, n_head=2):
    ks = jax.random.split(key, 20)

    def nrm(k, shape, scale=0.02):
        return (scale * jax.random.normal(k, shape)).astype(jnp.float32)

    D1 = n_dims + 1
    return {
        "n_head": n_head,
        "w_embed": nrm(ks[0], (D1, n_embd)),
        "b_embed": nrm(ks[1], (1, n_embd)),
        "wpe": nrm(ks[2], (n_positions, n_embd)),
        "ln1_g": 1.0 + nrm(ks[3], (n_layer, 1, n_embd)),
        "ln1_b": nrm(ks[4], (n_layer, 1, n_embd)),
        "attn_w": nrm(ks[5], (n_layer, n_embd, 3 * n_embd)),
        "attn_b": nrm(ks[6], (n_layer, 1, 3 * n_embd)),
        "attn_proj_w": nrm(ks[7], (n_layer, n_embd, n_embd)),
        "attn_proj_b": nrm(ks[8], (n_layer, 1, n_embd)),
        "ln2_g": 1.0 + nrm(ks[9], (n_layer, 1, n_embd)),
        "ln2_b": nrm(ks[10], (n_layer, 1, n_embd)),
        "fc_w": nrm(ks[11], (n_layer, n_embd, 4 * n_embd)),
        "fc_b": nrm(ks[12], (n_layer, 1, 4 * n_embd)),
        "fc_proj_w": nrm(ks[13], (n_layer, 4 * n_embd, n_embd)),
        "fc_proj_b": nrm(ks[14], (n_layer, 1, n_embd)),
        "lnf_g": 1.0 + nrm(ks[15], (1, n_embd)),
        "lnf_b": nrm(ks[16], (1, n_embd)),
        "w_read": nrm(ks[17], (n_embd, n_classes)),
        "b_read": nrm(ks[18], (1, n_classes)),
    }


def reference_forward(params, context_x, context_y, target_x):
    """Pure-JAX f32 reference replicating the PyTorch forward (eval mode)."""
    seq = jnp.concatenate([context_x, context_y[..., None].astype(jnp.float32)], axis=-1)
    tgt = jnp.concatenate([target_x, jnp.zeros_like(target_x[..., :1])], axis=-1)
    B, N, _ = seq.shape
    E = params["w_embed"].shape[1]
    H = params["n_head"]
    Hd = E // H
    L = params["ln1_g"].shape[0]

    def ln(v, g, b, eps=1e-5):
        mu = v.mean(-1, keepdims=True)
        var = ((v - mu) ** 2).mean(-1, keepdims=True)
        return (v - mu) / jnp.sqrt(var + eps) * g + b

    h = seq @ params["w_embed"] + params["b_embed"] + params["wpe"][:N][None]
    causal = jnp.tril(jnp.ones((N, N), bool))
    for l in range(L):
        hn = ln(h, params["ln1_g"][l], params["ln1_b"][l])
        qkv = hn @ params["attn_w"][l] + params["attn_b"][l]
        q, k, v = jnp.split(qkv, 3, axis=-1)
        q = q.reshape(B, N, H, Hd).transpose(0, 2, 1, 3)
        k = k.reshape(B, N, H, Hd).transpose(0, 2, 1, 3)
        v = v.reshape(B, N, H, Hd).transpose(0, 2, 1, 3)
        s = jnp.einsum("bhqd,bhkd->bhqk", q, k) / math.sqrt(Hd)
        s = jnp.where(causal[None, None], s, jnp.finfo(jnp.float32).min)
        p = jax.nn.softmax(s, -1)
        o = jnp.einsum("bhqk,bhkd->bhqd", p, v).transpose(0, 2, 1, 3).reshape(B, N, E)
        h = h + (o @ params["attn_proj_w"][l] + params["attn_proj_b"][l])
        hn2 = ln(h, params["ln2_g"][l], params["ln2_b"][l])
        fc = hn2 @ params["fc_w"][l] + params["fc_b"][l]
        act = 0.5 * fc * (1.0 + jnp.tanh(math.sqrt(2.0 / math.pi) * (fc + 0.044715 * fc ** 3)))
        h = h + (act @ params["fc_proj_w"][l] + params["fc_proj_b"][l])
    h = ln(h, params["lnf_g"], params["lnf_b"])
    pooled = h.mean(1)
    temb = (tgt @ params["w_embed"] + params["b_embed"])[:, 0, :]
    return (pooled + temb) @ params["w_read"] + params["b_read"]


if __name__ == "__main__":
    key = jax.random.PRNGKey(0)
    n_dims, n_positions, n_classes = 10, 16, 3
    n_embd, n_layer, n_head = 32, 2, 2
    N_ctx = 8

    kp, kx, ky, kt, kx2, ky2, kt2 = jax.random.split(key, 7)
    params = init_params(kp, n_dims, n_positions, n_classes,
                         n_embd=n_embd, n_layer=n_layer, n_head=n_head)

    # Test 1: small batch -> single grid step.
    B = 2
    context_x = jax.random.normal(kx, (B, N_ctx, n_dims), jnp.float32)
    context_y = jax.random.randint(ky, (B, N_ctx), 0, n_classes).astype(jnp.float32)
    target_x = jax.random.normal(kt, (B, 1, n_dims), jnp.float32)
    logits = im_context_transformer_forward(params, context_x, context_y, target_x)
    jax.block_until_ready(logits)
    ref = reference_forward(params, context_x, context_y, target_x)
    assert logits.shape == (B, n_classes)
    # bf16 MXU operands + approx reciprocal => slightly relaxed tolerance vs f32 reference.
    np.testing.assert_allclose(np.asarray(logits), np.asarray(ref), atol=5e-3, rtol=5e-2)

    # Test 2: exercises the multi-step grid + batch padding path (tiny target_rows so the
    # block logic kicks in at small test shapes; production default is 256 rows/step).
    B2 = 5
    context_x2 = jax.random.normal(kx2, (B2, N_ctx, n_dims), jnp.float32)
    context_y2 = jax.random.randint(ky2, (B2, N_ctx), 0, n_classes).astype(jnp.float32)
    target_x2 = jax.random.normal(kt2, (B2, 1, n_dims), jnp.float32)
    logits2 = im_context_transformer_forward(params, context_x2, context_y2, target_x2,
                                             target_rows=16)
    jax.block_until_ready(logits2)
    ref2 = reference_forward(params, context_x2, context_y2, target_x2)
    assert logits2.shape == (B2, n_classes)
    np.testing.assert_allclose(np.asarray(logits2), np.asarray(ref2), atol=5e-3, rtol=5e-2)

    print("KERNEL_OK")
</pallas_src>

<mosaic_0001>
module attributes {stable_mosaic.version = 11 : i64} {
  func.func @kernel(%arg0: i32, %arg1: memref<2x8x11xf32, #tpu.memory_space<vmem>>, %arg2: memref<2x1x11xf32, #tpu.memory_space<vmem>>, %arg3: memref<11x32xbf16, #tpu.memory_space<vmem>>, %arg4: memref<8x32xf32, #tpu.memory_space<vmem>>, %arg5: memref<2x32x96xbf16, #tpu.memory_space<vmem>>, %arg6: memref<2x1x96xf32, #tpu.memory_space<vmem>>, %arg7: memref<2x32x32xbf16, #tpu.memory_space<vmem>>, %arg8: memref<2x6x32xf32, #tpu.memory_space<vmem>>, %arg9: memref<3x32xf32, #tpu.memory_space<vmem>>, %arg10: memref<2x32x128xbf16, #tpu.memory_space<vmem>>, %arg11: memref<2x1x128xf32, #tpu.memory_space<vmem>>, %arg12: memref<2x128x32xbf16, #tpu.memory_space<vmem>>, %arg13: memref<32x128xbf16, #tpu.memory_space<vmem>>, %arg14: memref<1x128xf32, #tpu.memory_space<vmem>>, %arg15: memref<1x2x128xf32, #tpu.memory_space<vmem>>) attributes {dimension_semantics = [#tpu.dimension_semantics<parallel>], iteration_bounds = array<i64: 1>, scalar_prefetch = 0 : i64, scratch_operands = 0 : i64, tpu.core_type = #tpu.core_type<tc>, window_params = [{transform_indices = @transform_0, window_bounds = array<i64: 2, 8, 11>}, {transform_indices = @transform_1, window_bounds = array<i64: 2, 1, 11>}, {pipeline_mode = #tpu.pipeline_mode<synchronous>, transform_indices = @transform_2, window_bounds = array<i64: 11, 32>}, {pipeline_mode = #tpu.pipeline_mode<synchronous>, transform_indices = @transform_3, window_bounds = array<i64: 8, 32>}, {pipeline_mode = #tpu.pipeline_mode<synchronous>, transform_indices = @transform_4, window_bounds = array<i64: 2, 32, 96>}, {pipeline_mode = #tpu.pipeline_mode<synchronous>, transform_indices = @transform_5, window_bounds = array<i64: 2, 1, 96>}, {pipeline_mode = #tpu.pipeline_mode<synchronous>, transform_indices = @transform_6, window_bounds = array<i64: 2, 32, 32>}, {pipeline_mode = #tpu.pipeline_mode<synchronous>, transform_indices = @transform_7, window_bounds = array<i64: 2, 6, 32>}, {pipeline_mode = #tpu.pipeline_mode<synchronous>, transform_indices = @transform_8, window_bounds = array<i64: 3, 32>}, {pipeline_mode = #tpu.pipeline_mode<synchronous>, transform_indices = @transform_9, window_bounds = array<i64: 2, 32, 128>}, {pipeline_mode = #tpu.pipeline_mode<synchronous>, transform_indices = @transform_10, window_bounds = array<i64: 2, 1, 128>}, {pipeline_mode = #tpu.pipeline_mode<synchronous>, transform_indices = @transform_11, window_bounds = array<i64: 2, 128, 32>}, {pipeline_mode = #tpu.pipeline_mode<synchronous>, transform_indices = @transform_12, window_bounds = array<i64: 32, 128>}, {pipeline_mode = #tpu.pipeline_mode<synchronous>, transform_indices = @transform_13, window_bounds = array<i64: 1, 128>}, {transform_indices = @transform_14, window_bounds = array<i64: 1, 2, 128>}]} {
    %c0 = arith.constant 0 : index
    %c0_0 = arith.constant 0 : index
    %0 = vector.load %arg3[%c0, %c0_0] : memref<11x32xbf16, #tpu.memory_space<vmem>>, vector<11x32xbf16>
    %c0_1 = arith.constant 0 : index
    %c0_2 = arith.constant 0 : index
    %c0_3 = arith.constant 0 : index
    %1 = vector.load %arg1[%c0_1, %c0_2, %c0_3] : memref<2x8x11xf32, #tpu.memory_space<vmem>>, vector<2x8x11xf32>
    %2 = vector.shape_cast %1 : vector<2x8x11xf32> to vector<16x11xf32>
    %3 = arith.truncf %2 : vector<16x11xf32> to vector<16x11xbf16>
    %cst = arith.constant dense<0.000000e+00> : vector<16x32xf32>
    %4 = tpu.matmul %3, %0, %cst {dimension_numbers = #tpu.dot_dimension_numbers<[1], [0], [0], [1], [0, 0, 1, 1], [], []>} : vector<16x11xbf16>, vector<11x32xbf16>, vector<16x32xf32> -> vector<16x32xf32>
    %5 = vector.shape_cast %4 : vector<16x32xf32> to vector<2x8x32xf32>
    %c0_4 = arith.constant 0 : index
    %c0_5 = arith.constant 0 : index
    %6 = vector.load %arg4[%c0_4, %c0_5] : memref<8x32xf32, #tpu.memory_space<vmem>>, vector<8x32xf32>
    %7 = vector.shape_cast %6 : vector<8x32xf32> to vector<1x8x32xf32>
    %8 = vector.broadcast %7 : vector<1x8x32xf32> to vector<2x8x32xf32>
    %9 = arith.addf %5, %8 : vector<2x8x32xf32>
    %10 = vector.shape_cast %9 : vector<2x8x32xf32> to vector<16x32xf32>
    %11 = tpu.iota {dimensions = array<i32: 0>} : vector<8x8xi32>
    %12 = tpu.iota {dimensions = array<i32: 1>} : vector<8x8xi32>
    %13 = arith.cmpi sle, %12, %11 : vector<8x8xi32>
    %cst_6 = arith.constant 0.000000e+00 : f32
    %cst_7 = arith.constant -1.000000e+09 : f32
    %14 = vector.broadcast %cst_6 : f32 to vector<8x8xf32>
    %15 = vector.broadcast %cst_7 : f32 to vector<8x8xf32>
    %16 = arith.select %13, %14, %15 : vector<8x8xi1>, vector<8x8xf32>
    %c0_8 = arith.constant 0 : index
    %c0_9 = arith.constant 0 : index
    %c0_10 = arith.constant 0 : index
    %17 = vector.load %arg8[%c0_8, %c0_9, %c0_10] : memref<2x6x32xf32, #tpu.memory_space<vmem>>, vector<1x6x32xf32>
    %18 = vector.shape_cast %17 : vector<1x6x32xf32> to vector<6x32xf32>
    %19 = vector.extract_strided_slice %18 {offsets = [0, 0], sizes = [1, 32], strides = [1, 1]} : vector<6x32xf32> to vector<1x32xf32>
    %20 = vector.extract_strided_slice %18 {offsets = [1, 0], sizes = [1, 32], strides = [1, 1]} : vector<6x32xf32> to vector<1x32xf32>
    %21 = vector.extract_strided_slice %18 {offsets = [2, 0], sizes = [1, 32], strides = [1, 1]} : vector<6x32xf32> to vector<1x32xf32>
    %22 = vector.extract_strided_slice %18 {offsets = [3, 0], sizes = [1, 32], strides = [1, 1]} : vector<6x32xf32> to vector<1x32xf32>
    %23 = vector.extract_strided_slice %18 {offsets = [4, 0], sizes = [1, 32], strides = [1, 1]} : vector<6x32xf32> to vector<1x32xf32>
    %24 = vector.extract_strided_slice %18 {offsets = [5, 0], sizes = [1, 32], strides = [1, 1]} : vector<6x32xf32> to vector<1x32xf32>
    %cst_11 = arith.constant dense<0.000000e+00> : vector<16xf32>
    %25 = vector.multi_reduction <add>, %10, %cst_11 [1] : vector<16x32xf32> to vector<16xf32>
    %26 = vector.shape_cast %25 : vector<16xf32> to vector<16x1xf32>
    %cst_12 = arith.constant 3.200000e+01 : f32
    %27 = vector.broadcast %cst_12 : f32 to vector<16x1xf32>
    %28 = arith.divf %26, %27 : vector<16x1xf32>
    %29 = vector.broadcast %28 : vector<16x1xf32> to vector<16x32xf32>
    %30 = arith.subf %10, %29 : vector<16x32xf32>
    %31 = arith.mulf %30, %30 : vector<16x32xf32>
    %cst_13 = arith.constant dense<0.000000e+00> : vector<16xf32>
    %32 = vector.multi_reduction <add>, %31, %cst_13 [1] : vector<16x32xf32> to vector<16xf32>
    %33 = vector.shape_cast %32 : vector<16xf32> to vector<16x1xf32>
    %cst_14 = arith.constant 3.200000e+01 : f32
    %34 = vector.broadcast %cst_14 : f32 to vector<16x1xf32>
    %35 = arith.divf %33, %34 : vector<16x1xf32>
    %36 = vector.broadcast %28 : vector<16x1xf32> to vector<16x32xf32>
    %37 = arith.subf %10, %36 : vector<16x32xf32>
    %cst_15 = arith.constant 9.99999974E-6 : f32
    %38 = vector.broadcast %cst_15 : f32 to vector<16x1xf32>
    %39 = arith.addf %35, %38 : vector<16x1xf32>
    %40 = math.rsqrt %39 : vector<16x1xf32>
    %41 = vector.broadcast %40 : vector<16x1xf32> to vector<16x32xf32>
    %42 = arith.mulf %37, %41 : vector<16x32xf32>
    %43 = vector.broadcast %19 : vector<1x32xf32> to vector<16x32xf32>
    %44 = arith.mulf %42, %43 : vector<16x32xf32>
    %45 = vector.broadcast %20 : vector<1x32xf32> to vector<16x32xf32>
    %46 = arith.addf %44, %45 : vector<16x32xf32>
    %47 = arith.truncf %46 : vector<16x32xf32> to vector<16x32xbf16>
    %c0_16 = arith.constant 0 : index
    %c0_17 = arith.constant 0 : index
    %c0_18 = arith.constant 0 : index
    %48 = vector.load %arg5[%c0_16, %c0_17, %c0_18] : memref<2x32x96xbf16, #tpu.memory_space<vmem>>, vector<1x32x96xbf16>
    %49 = vector.shape_cast %48 : vector<1x32x96xbf16> to vector<32x96xbf16>
    %cst_19 = arith.constant dense<0.000000e+00> : vector<16x96xf32>
    %50 = tpu.matmul %47, %49, %cst_19 {dimension_numbers = #tpu.dot_dimension_numbers<[1], [0], [0], [1], [0, 0, 1, 1], [], []>} : vector<16x32xbf16>, vector<32x96xbf16>, vector<16x96xf32> -> vector<16x96xf32>
    %c0_20 = arith.constant 0 : index
    %c0_21 = arith.constant 0 : index
    %c0_22 = arith.constant 0 : index
    %51 = vector.load %arg6[%c0_20, %c0_21, %c0_22] : memref<2x1x96xf32, #tpu.memory_space<vmem>>, vector<1x1x96xf32>
    %52 = vector.shape_cast %51 : vector<1x1x96xf32> to vector<1x96xf32>
    %53 = vector.broadcast %52 : vector<1x96xf32> to vector<16x96xf32>
    %54 = arith.addf %50, %53 : vector<16x96xf32>
    %55 = vector.extract_strided_slice %54 {offsets = [0, 0], sizes = [16, 16], strides = [1, 1]} : vector<16x96xf32> to vector<16x16xf32>
    %56 = vector.shape_cast %55 : vector<16x16xf32> to vector<2x8x16xf32>
    %57 = vector.extract_strided_slice %54 {offsets = [0, 16], sizes = [16, 16], strides = [1, 1]} : vector<16x96xf32> to vector<16x16xf32>
    %58 = vector.shape_cast %57 : vector<16x16xf32> to vector<2x8x16xf32>
    %59 = tpu.concatenate %56, %58 in 0 : vector<2x8x16xf32>, vector<2x8x16xf32> -> vector<4x8x16xf32>
    %60 = arith.truncf %59 : vector<4x8x16xf32> to vector<4x8x16xbf16>
    %61 = vector.extract_strided_slice %54 {offsets = [0, 32], sizes = [16, 16], strides = [1, 1]} : vector<16x96xf32> to vector<16x16xf32>
    %62 = vector.shape_cast %61 : vector<16x16xf32> to vector<2x8x16xf32>
    %63 = vector.extract_strided_slice %54 {offsets = [0, 48], sizes = [16, 16], strides = [1, 1]} : vector<16x96xf32> to vector<16x16xf32>
    %64 = vector.shape_cast %63 : vector<16x16xf32> to vector<2x8x16xf32>
    %65 = tpu.concatenate %62, %64 in 0 : vector<2x8x16xf32>, vector<2x8x16xf32> -> vector<4x8x16xf32>
    %66 = arith.truncf %65 : vector<4x8x16xf32> to vector<4x8x16xbf16>
    %67 = vector.extract_strided_slice %54 {offsets = [0, 64], sizes = [16, 16], strides = [1, 1]} : vector<16x96xf32> to vector<16x16xf32>
    %68 = vector.shape_cast %67 : vector<16x16xf32> to vector<2x8x16xf32>
    %69 = vector.extract_strided_slice %54 {offsets = [0, 80], sizes = [16, 16], strides = [1, 1]} : vector<16x96xf32> to vector<16x16xf32>
    %70 = vector.shape_cast %69 : vector<16x16xf32> to vector<2x8x16xf32>
    %71 = tpu.concatenate %68, %70 in 0 : vector<2x8x16xf32>, vector<2x8x16xf32> -> vector<4x8x16xf32>
    %72 = arith.truncf %71 : vector<4x8x16xf32> to vector<4x8x16xbf16>
    "tpu.trace_start"() <{level = 10 : i32, message = "bqd,bkd->bqk"}> : () -> ()
    %cst_23 = arith.constant dense<0.000000e+00> : vector<4x8x8xf32>
    %73 = tpu.matmul %60, %66, %cst_23 {dimension_numbers = #tpu.dot_dimension_numbers<[2], [2], [1], [1], [0, 0, 0, 1, 1, 1], [0], [0]>} : vector<4x8x16xbf16>, vector<4x8x16xbf16>, vector<4x8x8xf32> -> vector<4x8x8xf32>
    "tpu.trace_stop"() : () -> ()
    %74 = vector.shape_cast %16 : vector<8x8xf32> to vector<1x8x8xf32>
    %75 = vector.broadcast %74 : vector<1x8x8xf32> to vector<4x8x8xf32>
    %76 = arith.addf %73, %75 : vector<4x8x8xf32>
    %cst_24 = arith.constant dense<0xFF800000> : vector<4x8xf32>
    %77 = vector.multi_reduction <maximumf>, %76, %cst_24 [2] : vector<4x8x8xf32> to vector<4x8xf32>
    %78 = vector.shape_cast %77 : vector<4x8xf32> to vector<4x8x1xf32>
    %79 = vector.broadcast %78 : vector<4x8x1xf32> to vector<4x8x8xf32>
    %80 = arith.subf %76, %79 : vector<4x8x8xf32>
    %81 = math.exp %80 : vector<4x8x8xf32>
    %cst_25 = arith.constant dense<0.000000e+00> : vector<4x8xf32>
    %82 = vector.multi_reduction <add>, %81, %cst_25 [2] : vector<4x8x8xf32> to vector<4x8xf32>
    %83 = vector.shape_cast %82 : vector<4x8xf32> to vector<4x8x1xf32>
    %84 = tpu.reciprocal %83 {approx = true} : vector<4x8x1xf32> -> vector<4x8x1xf32>
    %85 = vector.broadcast %84 : vector<4x8x1xf32> to vector<4x8x8xf32>
    %86 = arith.mulf %81, %85 : vector<4x8x8xf32>
    %87 = arith.truncf %86 : vector<4x8x8xf32> to vector<4x8x8xbf16>
    "tpu.trace_start"() <{level = 10 : i32, message = "bqk,bkd->bqd"}> : () -> ()
    %cst_26 = arith.constant dense<0.000000e+00> : vector<4x8x16xf32>
    %88 = tpu.matmul %87, %72, %cst_26 {dimension_numbers = #tpu.dot_dimension_numbers<[2], [1], [1], [2], [0, 0, 0, 1, 1, 2], [0], [0]>} : vector<4x8x8xbf16>, vector<4x8x16xbf16>, vector<4x8x16xf32> -> vector<4x8x16xf32>
    "tpu.trace_stop"() : () -> ()
    %89 = vector.extract_strided_slice %88 {offsets = [0, 0, 0], sizes = [2, 8, 16], strides = [1, 1, 1]} : vector<4x8x16xf32> to vector<2x8x16xf32>
    %90 = vector.shape_cast %89 : vector<2x8x16xf32> to vector<16x16xf32>
    %91 = vector.extract_strided_slice %88 {offsets = [2, 0, 0], sizes = [2, 8, 16], strides = [1, 1, 1]} : vector<4x8x16xf32> to vector<2x8x16xf32>
    %92 = vector.shape_cast %91 : vector<2x8x16xf32> to vector<16x16xf32>
    %93 = tpu.concatenate %90, %92 in 1 : vector<16x16xf32>, vector<16x16xf32> -> vector<16x32xf32>
    %94 = arith.truncf %93 : vector<16x32xf32> to vector<16x32xbf16>
    %c0_27 = arith.constant 0 : index
    %c0_28 = arith.constant 0 : index
    %c0_29 = arith.constant 0 : index
    %95 = vector.load %arg7[%c0_27, %c0_28, %c0_29] : memref<2x32x32xbf16, #tpu.memory_space<vmem>>, vector<1x32x32xbf16>
    %96 = vector.shape_cast %95 : vector<1x32x32xbf16> to vector<32x32xbf16>
    %cst_30 = arith.constant dense<0.000000e+00> : vector<16x32xf32>
    %97 = tpu.matmul %94, %96, %cst_30 {dimension_numbers = #tpu.dot_dimension_numbers<[1], [0], [0], [1], [0, 0, 1, 1], [], []>} : vector<16x32xbf16>, vector<32x32xbf16>, vector<16x32xf32> -> vector<16x32xf32>
    %98 = arith.addf %10, %97 : vector<16x32xf32>
    %99 = vector.broadcast %23 : vector<1x32xf32> to vector<16x32xf32>
    %100 = arith.addf %98, %99 : vector<16x32xf32>
    %cst_31 = arith.constant dense<0.000000e+00> : vector<16xf32>
    %101 = vector.multi_reduction <add>, %100, %cst_31 [1] : vector<16x32xf32> to vector<16xf32>
    %102 = vector.shape_cast %101 : vector<16xf32> to vector<16x1xf32>
    %cst_32 = arith.constant 3.200000e+01 : f32
    %103 = vector.broadcast %cst_32 : f32 to vector<16x1xf32>
    %104 = arith.divf %102, %103 : vector<16x1xf32>
    %105 = vector.broadcast %104 : vector<16x1xf32> to vector<16x32xf32>
    %106 = arith.subf %100, %105 : vector<16x32xf32>
    %107 = arith.mulf %106, %106 : vector<16x32xf32>
    %cst_33 = arith.constant dense<0.000000e+00> : vector<16xf32>
    %108 = vector.multi_reduction <add>, %107, %cst_33 [1] : vector<16x32xf32> to vector<16xf32>
    %109 = vector.shape_cast %108 : vector<16xf32> to vector<16x1xf32>
    %cst_34 = arith.constant 3.200000e+01 : f32
    %110 = vector.broadcast %cst_34 : f32 to vector<16x1xf32>
    %111 = arith.divf %109, %110 : vector<16x1xf32>
    %112 = vector.broadcast %104 : vector<16x1xf32> to vector<16x32xf32>
    %113 = arith.subf %100, %112 : vector<16x32xf32>
    %cst_35 = arith.constant 9.99999974E-6 : f32
    %114 = vector.broadcast %cst_35 : f32 to vector<16x1xf32>
    %115 = arith.addf %111, %114 : vector<16x1xf32>
    %116 = math.rsqrt %115 : vector<16x1xf32>
    %117 = vector.broadcast %116 : vector<16x1xf32> to vector<16x32xf32>
    %118 = arith.mulf %113, %117 : vector<16x32xf32>
    %119 = vector.broadcast %21 : vector<1x32xf32> to vector<16x32xf32>
    %120 = arith.mulf %118, %119 : vector<16x32xf32>
    %121 = vector.broadcast %22 : vector<1x32xf32> to vector<16x32xf32>
    %122 = arith.addf %120, %121 : vector<16x32xf32>
    %123 = arith.truncf %122 : vector<16x32xf32> to vector<16x32xbf16>
    %c0_36 = arith.constant 0 : index
    %c0_37 = arith.constant 0 : index
    %c0_38 = arith.constant 0 : index
    %124 = vector.load %arg10[%c0_36, %c0_37, %c0_38] : memref<2x32x128xbf16, #tpu.memory_space<vmem>>, vector<1x32x128xbf16>
    %125 = vector.shape_cast %124 : vector<1x32x128xbf16> to vector<32x128xbf16>
    %cst_39 = arith.constant dense<0.000000e+00> : vector<16x128xf32>
    %126 = tpu.matmul %123, %125, %cst_39 {dimension_numbers = #tpu.dot_dimension_numbers<[1], [0], [0], [1], [0, 0, 1, 1], [], []>} : vector<16x32xbf16>, vector<32x128xbf16>, vector<16x128xf32> -> vector<16x128xf32>
    %c0_40 = arith.constant 0 : index
    %c0_41 = arith.constant 0 : index
    %c0_42 = arith.constant 0 : index
    %127 = vector.load %arg11[%c0_40, %c0_41, %c0_42] : memref<2x1x128xf32, #tpu.memory_space<vmem>>, vector<1x1x128xf32>
    %128 = vector.shape_cast %127 : vector<1x1x128xf32> to vector<1x128xf32>
    %129 = vector.broadcast %128 : vector<1x128xf32> to vector<16x128xf32>
    %130 = arith.addf %126, %129 : vector<16x128xf32>
    %cst_43 = arith.constant 5.000000e-01 : f32
    %131 = vector.broadcast %cst_43 : f32 to vector<16x128xf32>
    %132 = arith.mulf %131, %130 : vector<16x128xf32>
    %cst_44 = arith.constant 4.471500e-02 : f32
    %133 = vector.broadcast %cst_44 : f32 to vector<16x128xf32>
    %134 = arith.mulf %133, %130 : vector<16x128xf32>
    %135 = arith.mulf %134, %130 : vector<16x128xf32>
    %136 = arith.mulf %135, %130 : vector<16x128xf32>
    %137 = arith.addf %130, %136 : vector<16x128xf32>
    %cst_45 = arith.constant 0.797884583 : f32
    %138 = vector.broadcast %cst_45 : f32 to vector<16x128xf32>
    %139 = arith.mulf %138, %137 : vector<16x128xf32>
    %140 = math.tanh %139 : vector<16x128xf32>
    %cst_46 = arith.constant 1.000000e+00 : f32
    %141 = vector.broadcast %cst_46 : f32 to vector<16x128xf32>
    %142 = arith.addf %141, %140 : vector<16x128xf32>
    %143 = arith.mulf %132, %142 : vector<16x128xf32>
    %144 = arith.truncf %143 : vector<16x128xf32> to vector<16x128xbf16>
    %c0_47 = arith.constant 0 : index
    %c0_48 = arith.constant 0 : index
    %c0_49 = arith.constant 0 : index
    %145 = vector.load %arg12[%c0_47, %c0_48, %c0_49] : memref<2x128x32xbf16, #tpu.memory_space<vmem>>, vector<1x128x32xbf16>
    %146 = vector.shape_cast %145 : vector<1x128x32xbf16> to vector<128x32xbf16>
    %cst_50 = arith.constant dense<0.000000e+00> : vector<16x32xf32>
    %147 = tpu.matmul %144, %146, %cst_50 {dimension_numbers = #tpu.dot_dimension_numbers<[1], [0], [0], [1], [0, 0, 1, 1], [], []>} : vector<16x128xbf16>, vector<128x32xbf16>, vector<16x32xf32> -> vector<16x32xf32>
    %148 = arith.addf %100, %147 : vector<16x32xf32>
    %149 = vector.broadcast %24 : vector<1x32xf32> to vector<16x32xf32>
    %150 = arith.addf %148, %149 : vector<16x32xf32>
    %c1 = arith.constant 1 : index
    %c0_51 = arith.constant 0 : index
    %c0_52 = arith.constant 0 : index
    %151 = vector.load %arg8[%c1, %c0_51, %c0_52] : memref<2x6x32xf32, #tpu.memory_space<vmem>>, vector<1x6x32xf32>
    %152 = vector.shape_cast %151 : vector<1x6x32xf32> to vector<6x32xf32>
    %153 = vector.extract_strided_slice %152 {offsets = [0, 0], sizes = [1, 32], strides = [1, 1]} : vector<6x32xf32> to vector<1x32xf32>
    %154 = vector.extract_strided_slice %152 {offsets = [1, 0], sizes = [1, 32], strides = [1, 1]} : vector<6x32xf32> to vector<1x32xf32>
    %155 = vector.extract_strided_slice %152 {offsets = [2, 0], sizes = [1, 32], strides = [1, 1]} : vector<6x32xf32> to vector<1x32xf32>
    %156 = vector.extract_strided_slice %152 {offsets = [3, 0], sizes = [1, 32], strides = [1, 1]} : vector<6x32xf32> to vector<1x32xf32>
    %157 = vector.extract_strided_slice %152 {offsets = [4, 0], sizes = [1, 32], strides = [1, 1]} : vector<6x32xf32> to vector<1x32xf32>
    %158 = vector.extract_strided_slice %152 {offsets = [5, 0], sizes = [1, 32], strides = [1, 1]} : vector<6x32xf32> to vector<1x32xf32>
    %cst_53 = arith.constant dense<0.000000e+00> : vector<16xf32>
    %159 = vector.multi_reduction <add>, %150, %cst_53 [1] : vector<16x32xf32> to vector<16xf32>
    %160 = vector.shape_cast %159 : vector<16xf32> to vector<16x1xf32>
    %cst_54 = arith.constant 3.200000e+01 : f32
    %161 = vector.broadcast %cst_54 : f32 to vector<16x1xf32>
    %162 = arith.divf %160, %161 : vector<16x1xf32>
    %163 = vector.broadcast %162 : vector<16x1xf32> to vector<16x32xf32>
    %164 = arith.subf %150, %163 : vector<16x32xf32>
    %165 = arith.mulf %164, %164 : vector<16x32xf32>
    %cst_55 = arith.constant dense<0.000000e+00> : vector<16xf32>
    %166 = vector.multi_reduction <add>, %165, %cst_55 [1] : vector<16x32xf32> to vector<16xf32>
    %167 = vector.shape_cast %166 : vector<16xf32> to vector<16x1xf32>
    %cst_56 = arith.constant 3.200000e+01 : f32
    %168 = vector.broadcast %cst_56 : f32 to vector<16x1xf32>
    %169 = arith.divf %167, %168 : vector<16x1xf32>
    %170 = vector.broadcast %162 : vector<16x1xf32> to vector<16x32xf32>
    %171 = arith.subf %150, %170 : vector<16x32xf32>
    %cst_57 = arith.constant 9.99999974E-6 : f32
    %172 = vector.broadcast %cst_57 : f32 to vector<16x1xf32>
    %173 = arith.addf %169, %172 : vector<16x1xf32>
    %174 = math.rsqrt %173 : vector<16x1xf32>
    %175 = vector.broadcast %174 : vector<16x1xf32> to vector<16x32xf32>
    %176 = arith.mulf %171, %175 : vector<16x32xf32>
    %177 = vector.broadcast %153 : vector<1x32xf32> to vector<16x32xf32>
    %178 = arith.mulf %176, %177 : vector<16x32xf32>
    %179 = vector.broadcast %154 : vector<1x32xf32> to vector<16x32xf32>
    %180 = arith.addf %178, %179 : vector<16x32xf32>
    %181 = arith.truncf %180 : vector<16x32xf32> to vector<16x32xbf16>
    %c1_58 = arith.constant 1 : index
    %c0_59 = arith.constant 0 : index
    %c0_60 = arith.constant 0 : index
    %182 = vector.load %arg5[%c1_58, %c0_59, %c0_60] : memref<2x32x96xbf16, #tpu.memory_space<vmem>>, vector<1x32x96xbf16>
    %183 = vector.shape_cast %182 : vector<1x32x96xbf16> to vector<32x96xbf16>
    %cst_61 = arith.constant dense<0.000000e+00> : vector<16x96xf32>
    %184 = tpu.matmul %181, %183, %cst_61 {dimension_numbers = #tpu.dot_dimension_numbers<[1], [0], [0], [1], [0, 0, 1, 1], [], []>} : vector<16x32xbf16>, vector<32x96xbf16>, vector<16x96xf32> -> vector<16x96xf32>
    %c1_62 = arith.constant 1 : index
    %c0_63 = arith.constant 0 : index
    %c0_64 = arith.constant 0 : index
    %185 = vector.load %arg6[%c1_62, %c0_63, %c0_64] : memref<2x1x96xf32, #tpu.memory_space<vmem>>, vector<1x1x96xf32>
    %186 = vector.shape_cast %185 : vector<1x1x96xf32> to vector<1x96xf32>
    %187 = vector.broadcast %186 : vector<1x96xf32> to vector<16x96xf32>
    %188 = arith.addf %184, %187 : vector<16x96xf32>
    %189 = vector.extract_strided_slice %188 {offsets = [0, 0], sizes = [16, 16], strides = [1, 1]} : vector<16x96xf32> to vector<16x16xf32>
    %190 = vector.shape_cast %189 : vector<16x16xf32> to vector<2x8x16xf32>
    %191 = vector.extract_strided_slice %188 {offsets = [0, 16], sizes = [16, 16], strides = [1, 1]} : vector<16x96xf32> to vector<16x16xf32>
    %192 = vector.shape_cast %191 : vector<16x16xf32> to vector<2x8x16xf32>
    %193 = tpu.concatenate %190, %192 in 0 : vector<2x8x16xf32>, vector<2x8x16xf32> -> vector<4x8x16xf32>
    %194 = arith.truncf %193 : vector<4x8x16xf32> to vector<4x8x16xbf16>
    %195 = vector.extract_strided_slice %188 {offsets = [0, 32], sizes = [16, 16], strides = [1, 1]} : vector<16x96xf32> to vector<16x16xf32>
    %196 = vector.shape_cast %195 : vector<16x16xf32> to vector<2x8x16xf32>
    %197 = vector.extract_strided_slice %188 {offsets = [0, 48], sizes = [16, 16], strides = [1, 1]} : vector<16x96xf32> to vector<16x16xf32>
    %198 = vector.shape_cast %197 : vector<16x16xf32> to vector<2x8x16xf32>
    %199 = tpu.concatenate %196, %198 in 0 : vector<2x8x16xf32>, vector<2x8x16xf32> -> vector<4x8x16xf32>
    %200 = arith.truncf %199 : vector<4x8x16xf32> to vector<4x8x16xbf16>
    %201 = vector.extract_strided_slice %188 {offsets = [0, 64], sizes = [16, 16], strides = [1, 1]} : vector<16x96xf32> to vector<16x16xf32>
    %202 = vector.shape_cast %201 : vector<16x16xf32> to vector<2x8x16xf32>
    %203 = vector.extract_strided_slice %188 {offsets = [0, 80], sizes = [16, 16], strides = [1, 1]} : vector<16x96xf32> to vector<16x16xf32>
    %204 = vector.shape_cast %203 : vector<16x16xf32> to vector<2x8x16xf32>
    %205 = tpu.concatenate %202, %204 in 0 : vector<2x8x16xf32>, vector<2x8x16xf32> -> vector<4x8x16xf32>
    %206 = arith.truncf %205 : vector<4x8x16xf32> to vector<4x8x16xbf16>
    "tpu.trace_start"() <{level = 10 : i32, message = "bqd,bkd->bqk"}> : () -> ()
    %cst_65 = arith.constant dense<0.000000e+00> : vector<4x8x8xf32>
    %207 = tpu.matmul %194, %200, %cst_65 {dimension_numbers = #tpu.dot_dimension_numbers<[2], [2], [1], [1], [0, 0, 0, 1, 1, 1], [0], [0]>} : vector<4x8x16xbf16>, vector<4x8x16xbf16>, vector<4x8x8xf32> -> vector<4x8x8xf32>
    "tpu.trace_stop"() : () -> ()
    %208 = vector.shape_cast %16 : vector<8x8xf32> to vector<1x8x8xf32>
    %209 = vector.broadcast %208 : vector<1x8x8xf32> to vector<4x8x8xf32>
    %210 = arith.addf %207, %209 : vector<4x8x8xf32>
    %cst_66 = arith.constant dense<0xFF800000> : vector<4x8xf32>
    %211 = vector.multi_reduction <maximumf>, %210, %cst_66 [2] : vector<4x8x8xf32> to vector<4x8xf32>
    %212 = vector.shape_cast %211 : vector<4x8xf32> to vector<4x8x1xf32>
    %213 = vector.broadcast %212 : vector<4x8x1xf32> to vector<4x8x8xf32>
    %214 = arith.subf %210, %213 : vector<4x8x8xf32>
    %215 = math.exp %214 : vector<4x8x8xf32>
    %cst_67 = arith.constant dense<0.000000e+00> : vector<4x8xf32>
    %216 = vector.multi_reduction <add>, %215, %cst_67 [2] : vector<4x8x8xf32> to vector<4x8xf32>
    %217 = vector.shape_cast %216 : vector<4x8xf32> to vector<4x8x1xf32>
    %218 = tpu.reciprocal %217 {approx = true} : vector<4x8x1xf32> -> vector<4x8x1xf32>
    %219 = vector.broadcast %218 : vector<4x8x1xf32> to vector<4x8x8xf32>
    %220 = arith.mulf %215, %219 : vector<4x8x8xf32>
    %221 = arith.truncf %220 : vector<4x8x8xf32> to vector<4x8x8xbf16>
    "tpu.trace_start"() <{level = 10 : i32, message = "bqk,bkd->bqd"}> : () -> ()
    %cst_68 = arith.constant dense<0.000000e+00> : vector<4x8x16xf32>
    %222 = tpu.matmul %221, %206, %cst_68 {dimension_numbers = #tpu.dot_dimension_numbers<[2], [1], [1], [2], [0, 0, 0, 1, 1, 2], [0], [0]>} : vector<4x8x8xbf16>, vector<4x8x16xbf16>, vector<4x8x16xf32> -> vector<4x8x16xf32>
    "tpu.trace_stop"() : () -> ()
    %223 = vector.extract_strided_slice %222 {offsets = [0, 0, 0], sizes = [2, 8, 16], strides = [1, 1, 1]} : vector<4x8x16xf32> to vector<2x8x16xf32>
    %224 = vector.shape_cast %223 : vector<2x8x16xf32> to vector<16x16xf32>
    %225 = vector.extract_strided_slice %222 {offsets = [2, 0, 0], sizes = [2, 8, 16], strides = [1, 1, 1]} : vector<4x8x16xf32> to vector<2x8x16xf32>
    %226 = vector.shape_cast %225 : vector<2x8x16xf32> to vector<16x16xf32>
    %227 = tpu.concatenate %224, %226 in 1 : vector<16x16xf32>, vector<16x16xf32> -> vector<16x32xf32>
    %228 = arith.truncf %227 : vector<16x32xf32> to vector<16x32xbf16>
    %c1_69 = arith.constant 1 : index
    %c0_70 = arith.constant 0 : index
    %c0_71 = arith.constant 0 : index
    %229 = vector.load %arg7[%c1_69, %c0_70, %c0_71] : memref<2x32x32xbf16, #tpu.memory_space<vmem>>, vector<1x32x32xbf16>
    %230 = vector.shape_cast %229 : vector<1x32x32xbf16> to vector<32x32xbf16>
    %cst_72 = arith.constant dense<0.000000e+00> : vector<16x32xf32>
    %231 = tpu.matmul %228, %230, %cst_72 {dimension_numbers = #tpu.dot_dimension_numbers<[1], [0], [0], [1], [0, 0, 1, 1], [], []>} : vector<16x32xbf16>, vector<32x32xbf16>, vector<16x32xf32> -> vector<16x32xf32>
    %232 = arith.addf %150, %231 : vector<16x32xf32>
    %233 = vector.broadcast %157 : vector<1x32xf32> to vector<16x32xf32>
    %234 = arith.addf %232, %233 : vector<16x32xf32>
    %cst_73 = arith.constant dense<0.000000e+00> : vector<16xf32>
    %235 = vector.multi_reduction <add>, %234, %cst_73 [1] : vector<16x32xf32> to vector<16xf32>
    %236 = vector.shape_cast %235 : vector<16xf32> to vector<16x1xf32>
    %cst_74 = arith.constant 3.200000e+01 : f32
    %237 = vector.broadcast %cst_74 : f32 to vector<16x1xf32>
    %238 = arith.divf %236, %237 : vector<16x1xf32>
    %239 = vector.broadcast %238 : vector<16x1xf32> to vector<16x32xf32>
    %240 = arith.subf %234, %239 : vector<16x32xf32>
    %241 = arith.mulf %240, %240 : vector<16x32xf32>
    %cst_75 = arith.constant dense<0.000000e+00> : vector<16xf32>
    %242 = vector.multi_reduction <add>, %241, %cst_75 [1] : vector<16x32xf32> to vector<16xf32>
    %243 = vector.shape_cast %242 : vector<16xf32> to vector<16x1xf32>
    %cst_76 = arith.constant 3.200000e+01 : f32
    %244 = vector.broadcast %cst_76 : f32 to vector<16x1xf32>
    %245 = arith.divf %243, %244 : vector<16x1xf32>
    %246 = vector.broadcast %238 : vector<16x1xf32> to vector<16x32xf32>
    %247 = arith.subf %234, %246 : vector<16x32xf32>
    %cst_77 = arith.constant 9.99999974E-6 : f32
    %248 = vector.broadcast %cst_77 : f32 to vector<16x1xf32>
    %249 = arith.addf %245, %248 : vector<16x1xf32>
    %250 = math.rsqrt %249 : vector<16x1xf32>
    %251 = vector.broadcast %250 : vector<16x1xf32> to vector<16x32xf32>
    %252 = arith.mulf %247, %251 : vector<16x32xf32>
    %253 = vector.broadcast %155 : vector<1x32xf32> to vector<16x32xf32>
    %254 = arith.mulf %252, %253 : vector<16x32xf32>
    %255 = vector.broadcast %156 : vector<1x32xf32> to vector<16x32xf32>
    %256 = arith.addf %254, %255 : vector<16x32xf32>
    %257 = arith.truncf %256 : vector<16x32xf32> to vector<16x32xbf16>
    %c1_78 = arith.constant 1 : index
    %c0_79 = arith.constant 0 : index
    %c0_80 = arith.constant 0 : index
    %258 = vector.load %arg10[%c1_78, %c0_79, %c0_80] : memref<2x32x128xbf16, #tpu.memory_space<vmem>>, vector<1x32x128xbf16>
    %259 = vector.shape_cast %258 : vector<1x32x128xbf16> to vector<32x128xbf16>
    %cst_81 = arith.constant dense<0.000000e+00> : vector<16x128xf32>
    %260 = tpu.matmul %257, %259, %cst_81 {dimension_numbers = #tpu.dot_dimension_numbers<[1], [0], [0], [1], [0, 0, 1, 1], [], []>} : vector<16x32xbf16>, vector<32x128xbf16>, vector<16x128xf32> -> vector<16x128xf32>
    %c1_82 = arith.constant 1 : index
    %c0_83 = arith.constant 0 : index
    %c0_84 = arith.constant 0 : index
    %261 = vector.load %arg11[%c1_82, %c0_83, %c0_84] : memref<2x1x128xf32, #tpu.memory_space<vmem>>, vector<1x1x128xf32>
    %262 = vector.shape_cast %261 : vector<1x1x128xf32> to vector<1x128xf32>
    %263 = vector.broadcast %262 : vector<1x128xf32> to vector<16x128xf32>
    %264 = arith.addf %260, %263 : vector<16x128xf32>
    %cst_85 = arith.constant 5.000000e-01 : f32
    %265 = vector.broadcast %cst_85 : f32 to vector<16x128xf32>
    %266 = arith.mulf %265, %264 : vector<16x128xf32>
    %cst_86 = arith.constant 4.471500e-02 : f32
    %267 = vector.broadcast %cst_86 : f32 to vector<16x128xf32>
    %268 = arith.mulf %267, %264 : vector<16x128xf32>
    %269 = arith.mulf %268, %264 : vector<16x128xf32>
    %270 = arith.mulf %269, %264 : vector<16x128xf32>
    %271 = arith.addf %264, %270 : vector<16x128xf32>
    %cst_87 = arith.constant 0.797884583 : f32
    %272 = vector.broadcast %cst_87 : f32 to vector<16x128xf32>
    %273 = arith.mulf %272, %271 : vector<16x128xf32>
    %274 = math.tanh %273 : vector<16x128xf32>
    %cst_88 = arith.constant 1.000000e+00 : f32
    %275 = vector.broadcast %cst_88 : f32 to vector<16x128xf32>
    %276 = arith.addf %275, %274 : vector<16x128xf32>
    %277 = arith.mulf %266, %276 : vector<16x128xf32>
    %278 = arith.truncf %277 : vector<16x128xf32> to vector<16x128xbf16>
    %c1_89 = arith.constant 1 : index
    %c0_90 = arith.constant 0 : index
    %c0_91 = arith.constant 0 : index
    %279 = vector.load %arg12[%c1_89, %c0_90, %c0_91] : memref<2x128x32xbf16, #tpu.memory_space<vmem>>, vector<1x128x32xbf16>
    %280 = vector.shape_cast %279 : vector<1x128x32xbf16> to vector<128x32xbf16>
    %cst_92 = arith.constant dense<0.000000e+00> : vector<16x32xf32>
    %281 = tpu.matmul %278, %280, %cst_92 {dimension_numbers = #tpu.dot_dimension_numbers<[1], [0], [0], [1], [0, 0, 1, 1], [], []>} : vector<16x128xbf16>, vector<128x32xbf16>, vector<16x32xf32> -> vector<16x32xf32>
    %282 = arith.addf %234, %281 : vector<16x32xf32>
    %283 = vector.broadcast %158 : vector<1x32xf32> to vector<16x32xf32>
    %284 = arith.addf %282, %283 : vector<16x32xf32>
    %c0_93 = arith.constant 0 : index
    %c0_94 = arith.constant 0 : index
    %285 = vector.load %arg9[%c0_93, %c0_94] : memref<3x32xf32, #tpu.memory_space<vmem>>, vector<3x32xf32>
    %286 = vector.extract_strided_slice %285 {offsets = [0, 0], sizes = [1, 32], strides = [1, 1]} : vector<3x32xf32> to vector<1x32xf32>
    %287 = vector.extract_strided_slice %285 {offsets = [1, 0], sizes = [1, 32], strides = [1, 1]} : vector<3x32xf32> to vector<1x32xf32>
    %cst_95 = arith.constant dense<0.000000e+00> : vector<16xf32>
    %288 = vector.multi_reduction <add>, %284, %cst_95 [1] : vector<16x32xf32> to vector<16xf32>
    %289 = vector.shape_cast %288 : vector<16xf32> to vector<16x1xf32>
    %cst_96 = arith.constant 3.200000e+01 : f32
    %290 = vector.broadcast %cst_96 : f32 to vector<16x1xf32>
    %291 = arith.divf %289, %290 : vector<16x1xf32>
    %292 = vector.broadcast %291 : vector<16x1xf32> to vector<16x32xf32>
    %293 = arith.subf %284, %292 : vector<16x32xf32>
    %294 = arith.mulf %293, %293 : vector<16x32xf32>
    %cst_97 = arith.constant dense<0.000000e+00> : vector<16xf32>
    %295 = vector.multi_reduction <add>, %294, %cst_97 [1] : vector<16x32xf32> to vector<16xf32>
    %296 = vector.shape_cast %295 : vector<16xf32> to vector<16x1xf32>
    %cst_98 = arith.constant 3.200000e+01 : f32
    %297 = vector.broadcast %cst_98 : f32 to vector<16x1xf32>
    %298 = arith.divf %296, %297 : vector<16x1xf32>
    %299 = vector.broadcast %291 : vector<16x1xf32> to vector<16x32xf32>
    %300 = arith.subf %284, %299 : vector<16x32xf32>
    %cst_99 = arith.constant 9.99999974E-6 : f32
    %301 = vector.broadcast %cst_99 : f32 to vector<16x1xf32>
    %302 = arith.addf %298, %301 : vector<16x1xf32>
    %303 = math.rsqrt %302 : vector<16x1xf32>
    %304 = vector.broadcast %303 : vector<16x1xf32> to vector<16x32xf32>
    %305 = arith.mulf %300, %304 : vector<16x32xf32>
    %306 = vector.broadcast %286 : vector<1x32xf32> to vector<16x32xf32>
    %307 = arith.mulf %305, %306 : vector<16x32xf32>
    %308 = vector.broadcast %287 : vector<1x32xf32> to vector<16x32xf32>
    %309 = arith.addf %307, %308 : vector<16x32xf32>
    %310 = vector.shape_cast %309 : vector<16x32xf32> to vector<2x8x32xf32>
    %cst_100 = arith.constant dense<0.000000e+00> : vector<2x32xf32>
    %311 = vector.multi_reduction <add>, %310, %cst_100 [1] : vector<2x8x32xf32> to vector<2x32xf32>
    %cst_101 = arith.constant 8.000000e+00 : f32
    %312 = vector.broadcast %cst_101 : f32 to vector<2x32xf32>
    %313 = arith.divf %311, %312 : vector<2x32xf32>
    %c0_102 = arith.constant 0 : index
    %c0_103 = arith.constant 0 : index
    %c0_104 = arith.constant 0 : index
    %314 = vector.load %arg2[%c0_102, %c0_103, %c0_104] : memref<2x1x11xf32, #tpu.memory_space<vmem>>, vector<2x1x11xf32>
    %315 = vector.shape_cast %314 : vector<2x1x11xf32> to vector<2x11xf32>
    %316 = arith.truncf %315 : vector<2x11xf32> to vector<2x11xbf16>
    %cst_105 = arith.constant dense<0.000000e+00> : vector<2x32xf32>
    %317 = tpu.matmul %316, %0, %cst_105 {dimension_numbers = #tpu.dot_dimension_numbers<[1], [0], [0], [1], [0, 0, 1, 1], [], []>} : vector<2x11xbf16>, vector<11x32xbf16>, vector<2x32xf32> -> vector<2x32xf32>
    %318 = vector.extract_strided_slice %285 {offsets = [2, 0], sizes = [1, 32], strides = [1, 1]} : vector<3x32xf32> to vector<1x32xf32>
    %319 = vector.broadcast %318 : vector<1x32xf32> to vector<2x32xf32>
    %320 = arith.addf %317, %319 : vector<2x32xf32>
    %321 = arith.addf %313, %320 : vector<2x32xf32>
    %322 = arith.truncf %321 : vector<2x32xf32> to vector<2x32xbf16>
    %c0_106 = arith.constant 0 : index
    %c0_107 = arith.constant 0 : index
    %323 = vector.load %arg13[%c0_106, %c0_107] : memref<32x128xbf16, #tpu.memory_space<vmem>>, vector<32x128xbf16>
    %cst_108 = arith.constant dense<0.000000e+00> : vector<2x128xf32>
    %324 = tpu.matmul %322, %323, %cst_108 {dimension_numbers = #tpu.dot_dimension_numbers<[1], [0], [0], [1], [0, 0, 1, 1], [], []>} : vector<2x32xbf16>, vector<32x128xbf16>, vector<2x128xf32> -> vector<2x128xf32>
    %c0_109 = arith.constant 0 : index
    %c0_110 = arith.constant 0 : index
    %325 = vector.load %arg14[%c0_109, %c0_110] : memref<1x128xf32, #tpu.memory_space<vmem>>, vector<1x128xf32>
    %326 = vector.broadcast %325 : vector<1x128xf32> to vector<2x128xf32>
    %327 = arith.addf %324, %326 : vector<2x128xf32>
    %c0_111 = arith.constant 0 : index
    %c0_112 = arith.constant 0 : index
    %c0_113 = arith.constant 0 : index
    %328 = vector.load %arg15[%c0_111, %c0_112, %c0_113] : memref<1x2x128xf32, #tpu.memory_space<vmem>>, vector<1x2x128xf32>
    %329 = vector.shape_cast %328 : vector<1x2x128xf32> to vector<2x128xf32>
    %330 = vector.shape_cast %327 : vector<2x128xf32> to vector<1x2x128xf32>
    tpu.vector_store %arg15[%c0_111, %c0_112, %c0_113], %330 {strides = array<i32>} : memref<1x2x128xf32, #tpu.memory_space<vmem>>, vector<1x2x128xf32>,
    return
  }
  func.func @transform_0(%arg0: i32) -> (i32, i32, i32) {
    %c0_i32 = arith.constant 0 : i32
    %c0_i32_0 = arith.constant 0 : i32
    %c0_i32_1 = arith.constant 0 : i32
    return %arg0, %c0_i32, %c0_i32_0 : i32, i32, i32
  }
  func.func @transform_1(%arg0: i32) -> (i32, i32, i32) {
    %c0_i32 = arith.constant 0 : i32
    %c0_i32_0 = arith.constant 0 : i32
    %c0_i32_1 = arith.constant 0 : i32
    return %arg0, %c0_i32, %c0_i32_0 : i32, i32, i32
  }
  func.func @transform_2(%arg0: i32) -> (i32, i32) {
    %c0_i32 = arith.constant 0 : i32
    %c0_i32_0 = arith.constant 0 : i32
    %c0_i32_1 = arith.constant 0 : i32
    return %c0_i32, %c0_i32_0 : i32, i32
  }
  func.func @transform_3(%arg0: i32) -> (i32, i32) {
    %c0_i32 = arith.constant 0 : i32
    %c0_i32_0 = arith.constant 0 : i32
    %c0_i32_1 = arith.constant 0 : i32
    return %c0_i32, %c0_i32_0 : i32, i32
  }
  func.func @transform_4(%arg0: i32) -> (i32, i32, i32) {
    %c0_i32 = arith.constant 0 : i32
    %c0_i32_0 = arith.constant 0 : i32
    %c0_i32_1 = arith.constant 0 : i32
    %c0_i32_2 = arith.constant 0 : i32
    return %c0_i32, %c0_i32_0, %c0_i32_1 : i32, i32, i32
  }
  func.func @transform_5(%arg0: i32) -> (i32, i32, i32) {
    %c0_i32 = arith.constant 0 : i32
    %c0_i32_0 = arith.constant 0 : i32
    %c0_i32_1 = arith.constant 0 : i32
    %c0_i32_2 = arith.constant 0 : i32
    return %c0_i32, %c0_i32_0, %c0_i32_1 : i32, i32, i32
  }
  func.func @transform_6(%arg0: i32) -> (i32, i32, i32) {
    %c0_i32 = arith.constant 0 : i32
    %c0_i32_0 = arith.constant 0 : i32
    %c0_i32_1 = arith.constant 0 : i32
    %c0_i32_2 = arith.constant 0 : i32
    return %c0_i32, %c0_i32_0, %c0_i32_1 : i32, i32, i32
  }
  func.func @transform_7(%arg0: i32) -> (i32, i32, i32) {
    %c0_i32 = arith.constant 0 : i32
    %c0_i32_0 = arith.constant 0 : i32
    %c0_i32_1 = arith.constant 0 : i32
    %c0_i32_2 = arith.constant 0 : i32
    return %c0_i32, %c0_i32_0, %c0_i32_1 : i32, i32, i32
  }
  func.func @transform_8(%arg0: i32) -> (i32, i32) {
    %c0_i32 = arith.constant 0 : i32
    %c0_i32_0 = arith.constant 0 : i32
    %c0_i32_1 = arith.constant 0 : i32
    return %c0_i32, %c0_i32_0 : i32, i32
  }
  func.func @transform_9(%arg0: i32) -> (i32, i32, i32) {
    %c0_i32 = arith.constant 0 : i32
    %c0_i32_0 = arith.constant 0 : i32
    %c0_i32_1 = arith.constant 0 : i32
    %c0_i32_2 = arith.constant 0 : i32
    return %c0_i32, %c0_i32_0, %c0_i32_1 : i32, i32, i32
  }
  func.func @transform_10(%arg0: i32) -> (i32, i32, i32) {
    %c0_i32 = arith.constant 0 : i32
    %c0_i32_0 = arith.constant 0 : i32
    %c0_i32_1 = arith.constant 0 : i32
    %c0_i32_2 = arith.constant 0 : i32
    return %c0_i32, %c0_i32_0, %c0_i32_1 : i32, i32, i32
  }
  func.func @transform_11(%arg0: i32) -> (i32, i32, i32) {
    %c0_i32 = arith.constant 0 : i32
    %c0_i32_0 = arith.constant 0 : i32
    %c0_i32_1 = arith.constant 0 : i32
    %c0_i32_2 = arith.constant 0 : i32
    return %c0_i32, %c0_i32_0, %c0_i32_1 : i32, i32, i32
  }
  func.func @transform_12(%arg0: i32) -> (i32, i32) {
    %c0_i32 = arith.constant 0 : i32
    %c0_i32_0 = arith.constant 0 : i32
    %c0_i32_1 = arith.constant 0 : i32
    return %c0_i32, %c0_i32_0 : i32, i32
  }
  func.func @transform_13(%arg0: i32) -> (i32, i32) {
    %c0_i32 = arith.constant 0 : i32
    %c0_i32_0 = arith.constant 0 : i32
    %c0_i32_1 = arith.constant 0 : i32
    return %c0_i32, %c0_i32_0 : i32, i32
  }
  func.func @transform_14(%arg0: i32) -> (i32, i32, i32) {
    %c0_i32 = arith.constant 0 : i32
    %c0_i32_0 = arith.constant 0 : i32
    %c0_i32_1 = arith.constant 0 : i32
    return %arg0, %c0_i32, %c0_i32_0 : i32, i32, i32
  }
}

</mosaic_0001>

<llo_original>
// kernel: tpu_custom_call.1
$region0: #{tpu_custom_call.1}
  #allocation0 [shape = 'u32[]', space=smem, size = 0x4, offset = 0x4, fixed_abs, tag = 'smem constant byte address 0x4 - core index']
  #allocation1 [shape = 'u32[144,128]{1,0:T(1,128)}', space=vmem, size = 0x12000, scoped, tag = 'internal scratch']
  %s0 = inlined_call_operand.vmem [shape: f32[2,8,11], index: 0, kind: input, shape index: {}]
  %s1 = inlined_call_operand.vmem [shape: f32[2,1,11], index: 1, kind: input, shape index: {}]
  %s2 = inlined_call_operand.vmem [shape: bf16[11,32], index: 2, kind: input, shape index: {}]
  %s3 = inlined_call_operand.vmem [shape: f32[8,32], index: 3, kind: input, shape index: {}]
  %s4 = inlined_call_operand.vmem [shape: bf16[2,32,96], index: 4, kind: input, shape index: {}]
  %s5 = inlined_call_operand.vmem [shape: f32[2,1,96], index: 5, kind: input, shape index: {}]
  %s6 = inlined_call_operand.vmem [shape: bf16[2,32,32], index: 6, kind: input, shape index: {}]
  %s7 = inlined_call_operand.vmem [shape: f32[2,6,32], index: 7, kind: input, shape index: {}]
  %s8 = inlined_call_operand.vmem [shape: f32[3,32], index: 8, kind: input, shape index: {}]
  %s9 = inlined_call_operand.vmem [shape: bf16[2,32,128], index: 9, kind: input, shape index: {}]
  %s10 = inlined_call_operand.vmem [shape: f32[2,1,128], index: 10, kind: input, shape index: {}]
  %s11 = inlined_call_operand.vmem [shape: bf16[2,128,32], index: 11, kind: input, shape index: {}]
  %s12 = inlined_call_operand.vmem [shape: bf16[32,128], index: 12, kind: input, shape index: {}]
  %s13 = inlined_call_operand.vmem [shape: f32[1,128], index: 13, kind: input, shape index: {}]
  %s14 = inlined_call_operand.hbm [shape: f32[1,2,128], index: 14, kind: output, shape index: {}]
  %s15 = sld [smem:[#allocation0]]
  $region66: #{tpu_custom_call.1} parent=0
    _
  %s17 = ssub.s32 1, %s15
  %s18 = scalar_select 0, %s17, %s15
  $region1: #{tpu_custom_call.1} parent=0
    #allocation2 [shape = 'u8[1024]{0}', space=vmem, size = 0x400, scoped, tag = 'output window, operand 0, single buffered']
    #allocation3 [shape = 's32[1]{0}', space=sflag, size = 0x4, scoped, tag = 'scoped memory for tpu_custom_call.1']
    %19 = vsyncpa [#allocation3], 0
    // Predicated region
    $region2: #{tpu_custom_call.1} parent=1 // pred_check
      _
    $region3: #{tpu_custom_call.1} parent=1 // pred_check_branch
      %21 = sbr.rel (0) target = $region5
    $region4: #{tpu_custom_call.1} parent=1 // pred_region
      _
    $region5: #{tpu_custom_call.1} parent=1 // pred_fallthru
      _
    // Predicated region
    $region6: #{tpu_custom_call.1} parent=1 // pred_check
      _
    $region7: #{tpu_custom_call.1} parent=1 // pred_check_branch
      %23 = sbr.rel (0) target = $region9
    $region8: #{tpu_custom_call.1} parent=1 // pred_region
      _
    $region9: #{tpu_custom_call.1} parent=1 // pred_fallthru
      _
    // Predicated region
    $region10: #{tpu_custom_call.1} parent=1 // pred_check
      _
    $region11: #{tpu_custom_call.1} parent=1 // pred_check_branch
      %25 = sbr.rel (0) target = $region13
    $region12: #{tpu_custom_call.1} parent=1 // pred_region
      _
    $region13: #{tpu_custom_call.1} parent=1 // pred_fallthru
      _
    // Predicated region
    $region14: #{tpu_custom_call.1} parent=1 // pred_check
      _
    $region15: #{tpu_custom_call.1} parent=1 // pred_check_branch
      %27 = sbr.rel (0) target = $region17
    $region16: #{tpu_custom_call.1} parent=1 // pred_region
      _
    $region17: #{tpu_custom_call.1} parent=1 // pred_fallthru
      _
    // Predicated region
    $region18: #{tpu_custom_call.1} parent=1 // pred_check
      _
    $region19: #{tpu_custom_call.1} parent=1 // pred_check_branch
      %29 = sbr.rel (0) target = $region21
    $region20: #{tpu_custom_call.1} parent=1 // pred_region
      _
    $region21: #{tpu_custom_call.1} parent=1 // pred_fallthru
      _
    // Predicated region
    $region22: #{tpu_custom_call.1} parent=1 // pred_check
      _
    $region23: #{tpu_custom_call.1} parent=1 // pred_check_branch
      %31 = sbr.rel (0) target = $region25
    $region24: #{tpu_custom_call.1} parent=1 // pred_region
      _
    $region25: #{tpu_custom_call.1} parent=1 // pred_fallthru
      _
    // Predicated region
    $region26: #{tpu_custom_call.1} parent=1 // pred_check
      _
    $region27: #{tpu_custom_call.1} parent=1 // pred_check_branch
      %33 = sbr.rel (0) target = $region29
    $region28: #{tpu_custom_call.1} parent=1 // pred_region
      _
    $region29: #{tpu_custom_call.1} parent=1 // pred_fallthru
      _
    // Predicated region
    $region30: #{tpu_custom_call.1} parent=1 // pred_check
      _
    $region31: #{tpu_custom_call.1} parent=1 // pred_check_branch
      %35 = sbr.rel (0) target = $region33
    $region32: #{tpu_custom_call.1} parent=1 // pred_region
      _
    $region33: #{tpu_custom_call.1} parent=1 // pred_fallthru
      _
    // Predicated region
    $region34: #{tpu_custom_call.1} parent=1 // pred_check
      _
    $region35: #{tpu_custom_call.1} parent=1 // pred_check_branch
      %37 = sbr.rel (0) target = $region37
    $region36: #{tpu_custom_call.1} parent=1 // pred_region
      _
    $region37: #{tpu_custom_call.1} parent=1 // pred_fallthru
      _
    // Predicated region
    $region38: #{tpu_custom_call.1} parent=1 // pred_check
      _
    $region39: #{tpu_custom_call.1} parent=1 // pred_check_branch
      %39 = sbr.rel (0) target = $region41
    $region40: #{tpu_custom_call.1} parent=1 // pred_region
      _
    $region41: #{tpu_custom_call.1} parent=1 // pred_fallthru
      _
    // Predicated region
    $region42: #{tpu_custom_call.1} parent=1 // pred_check
      _
    $region43: #{tpu_custom_call.1} parent=1 // pred_check_branch
      %41 = sbr.rel (0) target = $region45
    $region44: #{tpu_custom_call.1} parent=1 // pred_region
      _
    $region45: #{tpu_custom_call.1} parent=1 // pred_fallthru
      _
    // Predicated region
    $region46: #{tpu_custom_call.1} parent=1 // pred_check
      _
    $region47: #{tpu_custom_call.1} parent=1 // pred_check_branch
      %43 = sbr.rel (0) target = $region49
    $region48: #{tpu_custom_call.1} parent=1 // pred_region
      _
    $region49: #{tpu_custom_call.1} parent=1 // pred_fallthru
      _
    // Predicated region
    $region50: #{tpu_custom_call.1} parent=1 // pred_check
      _
    $region51: #{tpu_custom_call.1} parent=1 // pred_check_branch
      %45 = sbr.rel (0) target = $region53
    $region52: #{tpu_custom_call.1} parent=1 // pred_region
      _
    $region53: #{tpu_custom_call.1} parent=1 // pred_fallthru
      _
    // Predicated region
    $region54: #{tpu_custom_call.1} parent=1 // pred_check
      _
    $region55: #{tpu_custom_call.1} parent=1 // pred_check_branch
      %47 = sbr.rel (0) target = $region57
    $region56: #{tpu_custom_call.1} parent=1 // pred_region
      _
    $region57: #{tpu_custom_call.1} parent=1 // pred_fallthru
      _
    %v49 = vld [vmem:[%s2] sm:$0xf]
    %v50 = vld [vmem:[%s2 + $0x4] sm:$0x3]
    %v51 = vld [vmem:[%s0] sm:$0xff]
    %v52 = vld [vmem:[%s0 + $0x8] sm:$0xff]
    %v53 = vpack.c.bf16 %v52, %v51
    %v56 = vunpack.c.l.b16 %v49
    %v57 = vunpack.c.l.b16 %v50
    %v58 = vpack.c.b16 %v57, %v56
    %vm59 = vcmask 89088
    %v61 = vsel %vm59, %v53, 0
    %vm63 = vcmask 1044480
    %vm64 = vcmask 1045504
    %v65 = vsel %vm63, 4294967295, 65535
    %v66 = vsel %vm64, %v65, 0
    %v68 = vand.u32 %v58, %v66
    %70 = vmatprep.subr.bf16.mxu0 0
    %71 = vmatpush1.bf16.msra.mxu0 0
    %72 = vmatprep.subr.bf16.mxu0 0
    %73 = vmatpush1.bf16.msra.mxu0 0
    %74 = vmatprep.subr.bf16.mxu0 0
    %75 = vmatpush1.bf16.msra.mxu0 0
    %76 = vmatprep.subr.bf16.mxu0 0
    %77 = vmatpush1.bf16.msra.mxu0 0
    %78 = vmatprep.subr.bf16.mxu0 0
    %79 = vmatpush1.bf16.msra.mxu0 0
    %80 = vmatprep.subr.bf16.mxu0 0
    %81 = vmatpush1.bf16.msra.mxu0 0
    %82 = vmatprep.subr.bf16.mxu0 0
    %83 = vmatpush1.bf16.msra.mxu0 0
    %84 = vmatprep.subr.bf16.mxu0 0
    %85 = vmatpush1.bf16.msra.mxu0 %v68
    %86 = vmatprep.subr.bf16.mxu0 0
    %87 = vmatpush2.bf16.msra.mxu0 0
    %88 = vmatprep.subr.bf16.mxu0 0
    %89 = vmatpush2.bf16.msra.mxu0 0
    %90 = vmatprep.subr.bf16.mxu0 0
    %91 = vmatpush2.bf16.msra.mxu0 0
    %92 = vmatprep.subr.bf16.mxu0 0
    %93 = vmatpush2.bf16.msra.mxu0 0
    %94 = vmatprep.subr.bf16.mxu0 0
    %95 = vmatpush2.bf16.msra.mxu0 0
    %96 = vmatprep.subr.bf16.mxu0 0
    %97 = vmatpush2.bf16.msra.mxu0 0
    %98 = vmatprep.subr.bf16.mxu0 0
    %99 = vmatpush2.bf16.msra.mxu0 0
    %100 = vmatprep.subr.bf16.mxu0 0
    %101 = vmatpush2.bf16.msra.mxu0 0
    %102 = vmatprep.mubr.bf16.mxu0 0
    %103 = vmatmul.mubr.bf16.gmra.mxu0 %v61
    %v104 = vpop.f32.mrf.mxu0
    %v105 = vadd.f32 0.0, %v104
    %v106 = vpop.f32.mrf.mxu0
    %v107 = vpop.f32.mrf.mxu0
    %v108 = vadd.f32 0.0, %v107
    %v109 = vpop.f32.mrf.mxu0
    %110 = vdwg.mxu0
    %v111 = vld [vmem:[%s3] sm:$0xff]
    %v112 = vadd.f32 %v105, %v111
    %v113 = vadd.f32 %v108, %v111
    %v114 = vlaneseq
    %v115 = vshrl.u32 %v114, 7
    %v116 = vlaneseq
    %v117 = vand.u32 %v116, 127
    %vm118 = vcmp.le.s32.totalorder %v117, %v115
    %v119 = vsel %vm118, 0.0, -1e+09
    %v120 = vld [vmem:[%s7] sm:$0x3f]
    %vm121 = vcmask 261120
    %v122 = vsel %vm121, %v112, 0.0
    %123 = vadd.xlane.f32.xlu0 %v122
    %v124 = vpop.xlane.xlu0 %123
    %v125 = vsel %vm121, %v113, 0.0
    %126 = vadd.xlane.f32.xlu0 %v125
    %v127 = vpop.xlane.xlu0 %126
    %v128 = vrcp.pop 32.0
    %v129 = vmul.f32 %v124, %v128
    %v130 = vmul.f32 %v127, %v128
    %v131 = vsub.f32 %v112, %v129
    %v132 = vsub.f32 %v113, %v130
    %v133 = vmul.f32 %v131, %v131
    %v134 = vmul.f32 %v132, %v132
    %v135 = vsel %vm121, %v133, 0.0
    %136 = vadd.xlane.f32.xlu0 %v135
    %v137 = vpop.xlane.xlu0 %136
    %v138 = vsel %vm121, %v134, 0.0
    %139 = vadd.xlane.f32.xlu0 %v138
    %v140 = vpop.xlane.xlu0 %139
    %v141 = vmul.f32 %v137, %v128
    %v142 = vmul.f32 %v140, %v128
    %v143 = vadd.f32 %v141, 1e-05
    %v144 = vadd.f32 %v142, 1e-05
    %v145 = vrsqrt.pop %v143
    %v146 = vrsqrt.pop %v144
    %v147 = vmul.f32 %v131, %v145
    %v148 = vmul.f32 %v132, %v146
    %v149 = vlaneseq
    %v150 = vshrl.u32 %v149, 7
    %v151 = vsub.s32 0, %v150
    %v152 = vrot.slane %v120, %v151
    %v153 = vmul.f32 %v147, %v152
    %v154 = vmul.f32 %v148, %v152
    %v155 = vlaneseq
    %v156 = vshrl.u32 %v155, 7
    %v157 = vsub.s32 1, %v156
    %v158 = vrot.slane %v120, %v157
    %v159 = vadd.f32 %v153, %v158
    %v160 = vadd.f32 %v154, %v158
    %v161 = vpack.c.bf16 %v160, %v159
    %v162 = vld [vmem:[%s4] sm:$0xf]
    %v163 = vld [vmem:[%s4 + $0x4] sm:$0xf]
    %v164 = vld [vmem:[%s4 + $0x8] sm:$0xf]
    %v165 = vld [vmem:[%s4 + $0xc] sm:$0xf]
    %v166 = vld [vmem:[%s5] sm:$0x1]
    %v168 = vlaneseq
    %v169 = vshrl.u32 %v168, 7
    %v170 = vsub.s32 0, %v169
    %v171 = vrot.slane %v166, %v170
    %v177 = vunpack.c.l.b16 %v162
    %v178 = vunpack.c.l.b16 %v163
    %v179 = vunpack.c.l.b16 %v164
    %v180 = vunpack.c.l.b16 %v165
    %v181 = vpack.c.b16 %v178, %v177
    %v182 = vpack.c.b16 %v180, %v179
    %v186 = vsel %vm121, %v161, 0
    %188 = vmatprep.subr.bf16.mxu0 0
    %189 = vmatpush1.bf16.msra.mxu0 0
    %190 = vmatprep.subr.bf16.mxu0 0
    %191 = vmatpush1.bf16.msra.mxu0 0
    %192 = vmatprep.subr.bf16.mxu0 0
    %193 = vmatpush1.bf16.msra.mxu0 0
    %194 = vmatprep.subr.bf16.mxu0 0
    %195 = vmatpush1.bf16.msra.mxu0 0
    %196 = vmatprep.subr.bf16.mxu0 0
    %197 = vmatpush1.bf16.msra.mxu0 0
    %198 = vmatprep.subr.bf16.mxu0 0
    %199 = vmatpush1.bf16.msra.mxu0 0
    %200 = vmatprep.subr.bf16.mxu0 0
    %201 = vmatpush1.bf16.msra.mxu0 %v182
    %202 = vmatprep.subr.bf16.mxu0 0
    %203 = vmatpush1.bf16.msra.mxu0 %v181
    %204 = vmatprep.subr.bf16.mxu0 0
    %205 = vmatpush2.bf16.msra.mxu0 0
    %206 = vmatprep.subr.bf16.mxu0 0
    %207 = vmatpush2.bf16.msra.mxu0 0
    %208 = vmatprep.subr.bf16.mxu0 0
    %209 = vmatpush2.bf16.msra.mxu0 0
    %210 = vmatprep.subr.bf16.mxu0 0
    %211 = vmatpush2.bf16.msra.mxu0 0
    %212 = vmatprep.subr.bf16.mxu0 0
    %213 = vmatpush2.bf16.msra.mxu0 0
    %214 = vmatprep.subr.bf16.mxu0 0
    %215 = vmatpush2.bf16.msra.mxu0 0
    %216 = vmatprep.subr.bf16.mxu0 0
    %217 = vmatpush2.bf16.msra.mxu0 0
    %218 = vmatprep.subr.bf16.mxu0 0
    %219 = vmatpush2.bf16.msra.mxu0 0
    %220 = vmatprep.mubr.bf16.mxu0 0
    %221 = vmatmul.mubr.bf16.gmra.mxu0 %v186
    %v222 = vpop.f32.mrf.mxu0
    %v223 = vadd.f32 %v171, %v222
    %v224 = vpop.f32.mrf.mxu0
    %v225 = vpop.f32.mrf.mxu0
    %v226 = vadd.f32 %v171, %v225
    %v227 = vpop.f32.mrf.mxu0
    %228 = vdwg.mxu0
    %231 = vrot.lane.b32.xlu0 %v223, 112
    %v232 = vpop.permute.xlu0 %231
    %233 = vrot.lane.b32.xlu0 %v226, 112
    %v234 = vpop.permute.xlu0 %233
    %v237 = vpack.c.bf16 %v223, %v223
    %v238 = vpack.c.bf16 %v226, %v226
    %v239 = vpack.c.bf16 %v232, %v232
    %v240 = vpack.c.bf16 %v234, %v234
    %242 = vrot.lane.b32.xlu0 %v237, 96
    %v243 = vpop.permute.xlu0 %242
    %vm244 = vcmask 130048
    %v246 = vsel %vm244, %v237, 0
    %v249 = vsel %vm244, %v243, 0
    %251 = vmatprep.subr.bf16.mxu0 0
    %252 = vmatpush1.bf16.xpose.msra.mxu0 0
    %253 = vmatprep.subr.bf16.mxu0 0
    %254 = vmatpush1.bf16.xpose.msra.mxu0 0
    %255 = vmatprep.subr.bf16.mxu0 0
    %256 = vmatpush1.bf16.xpose.msra.mxu0 0
    %257 = vmatprep.subr.bf16.mxu0 0
    %258 = vmatpush1.bf16.xpose.msra.mxu0 0
    %259 = vmatprep.subr.bf16.mxu0 0
    %260 = vmatpush1.bf16.xpose.msra.mxu0 0
    %261 = vmatprep.subr.bf16.mxu0 0
    %262 = vmatpush1.bf16.xpose.msra.mxu0 0
    %263 = vmatprep.subr.bf16.mxu0 0
    %264 = vmatpush1.bf16.xpose.msra.mxu0 0
    %265 = vmatprep.subr.bf16.mxu0 0
    %266 = vmatpush1.bf16.xpose.msra.mxu0 %v249
    %267 = vmatprep.subr.bf16.mxu0 0
    %268 = vmatpush2.bf16.xpose.msra.mxu0 0
    %269 = vmatprep.subr.bf16.mxu0 0
    %270 = vmatpush2.bf16.xpose.msra.mxu0 0
    %271 = vmatprep.subr.bf16.mxu0 0
    %272 = vmatpush2.bf16.xpose.msra.mxu0 0
    %273 = vmatprep.subr.bf16.mxu0 0
    %274 = vmatpush2.bf16.xpose.msra.mxu0 0
    %275 = vmatprep.subr.bf16.mxu0 0
    %276 = vmatpush2.bf16.xpose.msra.mxu0 0
    %277 = vmatprep.subr.bf16.mxu0 0
    %278 = vmatpush2.bf16.xpose.msra.mxu0 0
    %279 = vmatprep.subr.bf16.mxu0 0
    %280 = vmatpush2.bf16.xpose.msra.mxu0 0
    %281 = vmatprep.subr.bf16.mxu0 0
    %282 = vmatpush2.bf16.xpose.msra.mxu0 0
    %283 = vmatprep.mubr.bf16.mxu0 0
    %284 = vmatmul.mubr.bf16.gmra.mxu0 %v246
    %v285 = vpop.f32.mrf.mxu0
    %v286 = vadd.f32 %v119, %v285
    %v287 = vpop.f32.mrf.mxu0
    %v288 = vpop.f32.mrf.mxu0
    %v289 = vpop.f32.mrf.mxu0
    %290 = vdwg.mxu0
    %292 = vrot.lane.b32.xlu0 %v238, 96
    %v293 = vpop.permute.xlu0 %292
    %v295 = vsel %vm244, %v238, 0
    %v298 = vsel %vm244, %v293, 0
    %300 = vmatprep.subr.bf16.mxu0 0
    %301 = vmatpush1.bf16.xpose.msra.mxu0 0
    %302 = vmatprep.subr.bf16.mxu0 0
    %303 = vmatpush1.bf16.xpose.msra.mxu0 0
    %304 = vmatprep.subr.bf16.mxu0 0
    %305 = vmatpush1.bf16.xpose.msra.mxu0 0
    %306 = vmatprep.subr.bf16.mxu0 0
    %307 = vmatpush1.bf16.xpose.msra.mxu0 0
    %308 = vmatprep.subr.bf16.mxu0 0
    %309 = vmatpush1.bf16.xpose.msra.mxu0 0
    %310 = vmatprep.subr.bf16.mxu0 0
    %311 = vmatpush1.bf16.xpose.msra.mxu0 0
    %312 = vmatprep.subr.bf16.mxu0 0
    %313 = vmatpush1.bf16.xpose.msra.mxu0 0
    %314 = vmatprep.subr.bf16.mxu0 0
    %315 = vmatpush1.bf16.xpose.msra.mxu0 %v298
    %316 = vmatprep.subr.bf16.mxu0 0
    %317 = vmatpush2.bf16.xpose.msra.mxu0 0
    %318 = vmatprep.subr.bf16.mxu0 0
    %319 = vmatpush2.bf16.xpose.msra.mxu0 0
    %320 = vmatprep.subr.bf16.mxu0 0
    %321 = vmatpush2.bf16.xpose.msra.mxu0 0
    %322 = vmatprep.subr.bf16.mxu0 0
    %323 = vmatpush2.bf16.xpose.msra.mxu0 0
    %324 = vmatprep.subr.bf16.mxu0 0
    %325 = vmatpush2.bf16.xpose.msra.mxu0 0
    %326 = vmatprep.subr.bf16.mxu0 0
    %327 = vmatpush2.bf16.xpose.msra.mxu0 0
    %328 = vmatprep.subr.bf16.mxu0 0
    %329 = vmatpush2.bf16.xpose.msra.mxu0 0
    %330 = vmatprep.subr.bf16.mxu0 0
    %331 = vmatpush2.bf16.xpose.msra.mxu0 0
    %332 = vmatprep.mubr.bf16.mxu0 0
    %333 = vmatmul.mubr.bf16.gmra.mxu0 %v295
    %v334 = vpop.f32.mrf.mxu0
    %v335 = vadd.f32 %v119, %v334
    %v336 = vpop.f32.mrf.mxu0
    %v337 = vpop.f32.mrf.mxu0
    %v338 = vpop.f32.mrf.mxu0
    %339 = vdwg.mxu0
    %341 = vrot.lane.b32.xlu0 %v239, 96
    %v342 = vpop.permute.xlu0 %341
    %v344 = vsel %vm244, %v239, 0
    %v347 = vsel %vm244, %v342, 0
    %349 = vmatprep.subr.bf16.mxu0 0
    %350 = vmatpush1.bf16.xpose.msra.mxu0 0
    %351 = vmatprep.subr.bf16.mxu0 0
    %352 = vmatpush1.bf16.xpose.msra.mxu0 0
    %353 = vmatprep.subr.bf16.mxu0 0
    %354 = vmatpush1.bf16.xpose.msra.mxu0 0
    %355 = vmatprep.subr.bf16.mxu0 0
    %356 = vmatpush1.bf16.xpose.msra.mxu0 0
    %357 = vmatprep.subr.bf16.mxu0 0
    %358 = vmatpush1.bf16.xpose.msra.mxu0 0
    %359 = vmatprep.subr.bf16.mxu0 0
    %360 = vmatpush1.bf16.xpose.msra.mxu0 0
    %361 = vmatprep.subr.bf16.mxu0 0
    %362 = vmatpush1.bf16.xpose.msra.mxu0 0
    %363 = vmatprep.subr.bf16.mxu0 0
    %364 = vmatpush1.bf16.xpose.msra.mxu0 %v347
    %365 = vmatprep.subr.bf16.mxu0 0
    %366 = vmatpush2.bf16.xpose.msra.mxu0 0
    %367 = vmatprep.subr.bf16.mxu0 0
    %368 = vmatpush2.bf16.xpose.msra.mxu0 0
    %369 = vmatprep.subr.bf16.mxu0 0
    %370 = vmatpush2.bf16.xpose.msra.mxu0 0
    %371 = vmatprep.subr.bf16.mxu0 0
    %372 = vmatpush2.bf16.xpose.msra.mxu0 0
    %373 = vmatprep.subr.bf16.mxu0 0
    %374 = vmatpush2.bf16.xpose.msra.mxu0 0
    %375 = vmatprep.subr.bf16.mxu0 0
    %376 = vmatpush2.bf16.xpose.msra.mxu0 0
    %377 = vmatprep.subr.bf16.mxu0 0
    %378 = vmatpush2.bf16.xpose.msra.mxu0 0
    %379 = vmatprep.subr.bf16.mxu0 0
    %380 = vmatpush2.bf16.xpose.msra.mxu0 0
    %381 = vmatprep.mubr.bf16.mxu0 0
    %382 = vmatmul.mubr.bf16.gmra.mxu0 %v344
    %v383 = vpop.f32.mrf.mxu0
    %v384 = vadd.f32 %v119, %v383
    %v385 = vpop.f32.mrf.mxu0
    %v386 = vpop.f32.mrf.mxu0
    %v387 = vpop.f32.mrf.mxu0
    %388 = vdwg.mxu0
    %390 = vrot.lane.b32.xlu0 %v240, 96
    %v391 = vpop.permute.xlu0 %390
    %v393 = vsel %vm244, %v240, 0
    %v396 = vsel %vm244, %v391, 0
    %398 = vmatprep.subr.bf16.mxu0 0
    %399 = vmatpush1.bf16.xpose.msra.mxu0 0
    %400 = vmatprep.subr.bf16.mxu0 0
    %401 = vmatpush1.bf16.xpose.msra.mxu0 0
    %402 = vmatprep.subr.bf16.mxu0 0
    %403 = vmatpush1.bf16.xpose.msra.mxu0 0
    %404 = vmatprep.subr.bf16.mxu0 0
    %405 = vmatpush1.bf16.xpose.msra.mxu0 0
    %406 = vmatprep.subr.bf16.mxu0 0
    %407 = vmatpush1.bf16.xpose.msra.mxu0 0
    %408 = vmatprep.subr.bf16.mxu0 0
    %409 = vmatpush1.bf16.xpose.msra.mxu0 0
    %410 = vmatprep.subr.bf16.mxu0 0
    %411 = vmatpush1.bf16.xpose.msra.mxu0 0
    %412 = vmatprep.subr.bf16.mxu0 0
    %413 = vmatpush1.bf16.xpose.msra.mxu0 %v396
    %414 = vmatprep.subr.bf16.mxu0 0
    %415 = vmatpush2.bf16.xpose.msra.mxu0 0
    %416 = vmatprep.subr.bf16.mxu0 0
    %417 = vmatpush2.bf16.xpose.msra.mxu0 0
    %418 = vmatprep.subr.bf16.mxu0 0
    %419 = vmatpush2.bf16.xpose.msra.mxu0 0
    %420 = vmatprep.subr.bf16.mxu0 0
    %421 = vmatpush2.bf16.xpose.msra.mxu0 0
    %422 = vmatprep.subr.bf16.mxu0 0
    %423 = vmatpush2.bf16.xpose.msra.mxu0 0
    %424 = vmatprep.subr.bf16.mxu0 0
    %425 = vmatpush2.bf16.xpose.msra.mxu0 0
    %426 = vmatprep.subr.bf16.mxu0 0
    %427 = vmatpush2.bf16.xpose.msra.mxu0 0
    %428 = vmatprep.subr.bf16.mxu0 0
    %429 = vmatpush2.bf16.xpose.msra.mxu0 0
    %430 = vmatprep.mubr.bf16.mxu0 0
    %431 = vmatmul.mubr.bf16.gmra.mxu0 %v393
    %v432 = vpop.f32.mrf.mxu0
    %v433 = vadd.f32 %v119, %v432
    %v434 = vpop.f32.mrf.mxu0
    %v435 = vpop.f32.mrf.mxu0
    %v436 = vpop.f32.mrf.mxu0
    %437 = vdwg.mxu0
    %vm438 = vcmask 64512
    %v439 = vsel %vm438, %v286, -inf
    %440 = vmax.xlane.f32.xlu0 %v439
    %v441 = vpop.xlane.xlu0 %440
    %v442 = vsel %vm438, %v335, -inf
    %443 = vmax.xlane.f32.xlu0 %v442
    %v444 = vpop.xlane.xlu0 %443
    %v445 = vsel %vm438, %v384, -inf
    %446 = vmax.xlane.f32.xlu0 %v445
    %v447 = vpop.xlane.xlu0 %446
    %v448 = vsel %vm438, %v433, -inf
    %449 = vmax.xlane.f32.xlu0 %v448
    %v450 = vpop.xlane.xlu0 %449
    %v451 = vsub.f32 %v286, %v441
    %v452 = vsub.f32 %v335, %v444
    %v453 = vsub.f32 %v384, %v447
    %v454 = vsub.f32 %v433, %v450
    %v455 = vmul.f32 %v451, 1.442695
    %v456 = vpow.pop %v455
    %v457 = vmul.f32 %v452, 1.442695
    %v458 = vpow.pop %v457
    %v459 = vmul.f32 %v453, 1.442695
    %v460 = vpow.pop %v459
    %v461 = vmul.f32 %v454, 1.442695
    %v462 = vpow.pop %v461
    %v463 = vsel %vm438, %v456, 0.0
    %464 = vadd.xlane.f32.xlu0 %v463
    %v465 = vpop.xlane.xlu0 %464
    %v466 = vsel %vm438, %v458, 0.0
    %467 = vadd.xlane.f32.xlu0 %v466
    %v468 = vpop.xlane.xlu0 %467
    %v469 = vsel %vm438, %v460, 0.0
    %470 = vadd.xlane.f32.xlu0 %v469
    %v471 = vpop.xlane.xlu0 %470
    %v472 = vsel %vm438, %v462, 0.0
    %473 = vadd.xlane.f32.xlu0 %v472
    %v474 = vpop.xlane.xlu0 %473
    %v475 = vrcp.pop %v465
    %v476 = vrcp.pop %v468
    %v477 = vrcp.pop %v471
    %v478 = vrcp.pop %v474
    %v479 = vmul.f32 %v456, %v475
    %v480 = vmul.f32 %v458, %v476
    %v481 = vmul.f32 %v460, %v477
    %v482 = vmul.f32 %v462, %v478
    %v483 = vpack.c.bf16 %v479, %v479
    %v484 = vpack.c.bf16 %v480, %v480
    %v485 = vpack.c.bf16 %v481, %v481
    %v486 = vpack.c.bf16 %v482, %v482
    %487 = vrot.lane.b32.xlu0 %v237, 64
    %v488 = vpop.permute.xlu0 %487
    %v490 = vsel %vm438, %v483, 0
    %vm492 = vcmask 1043456
    %v494 = vsel %vm492, %v488, 0
    %496 = vmatprep.subr.bf16.mxu0 0
    %497 = vmatpush1.bf16.msra.mxu0 0
    %498 = vmatprep.subr.bf16.mxu0 0
    %499 = vmatpush1.bf16.msra.mxu0 0
    %500 = vmatprep.subr.bf16.mxu0 0
    %501 = vmatpush1.bf16.msra.mxu0 0
    %502 = vmatprep.subr.bf16.mxu0 0
    %503 = vmatpush1.bf16.msra.mxu0 0
    %504 = vmatprep.subr.bf16.mxu0 0
    %505 = vmatpush1.bf16.msra.mxu0 0
    %506 = vmatprep.subr.bf16.mxu0 0
    %507 = vmatpush1.bf16.msra.mxu0 0
    %508 = vmatprep.subr.bf16.mxu0 0
    %509 = vmatpush1.bf16.msra.mxu0 0
    %510 = vmatprep.subr.bf16.mxu0 0
    %511 = vmatpush1.bf16.msra.mxu0 %v494
    %512 = vmatprep.subr.bf16.mxu0 0
    %513 = vmatpush2.bf16.msra.mxu0 0
    %514 = vmatprep.subr.bf16.mxu0 0
    %515 = vmatpush2.bf16.msra.mxu0 0
    %516 = vmatprep.subr.bf16.mxu0 0
    %517 = vmatpush2.bf16.msra.mxu0 0
    %518 = vmatprep.subr.bf16.mxu0 0
    %519 = vmatpush2.bf16.msra.mxu0 0
    %520 = vmatprep.subr.bf16.mxu0 0
    %521 = vmatpush2.bf16.msra.mxu0 0
    %522 = vmatprep.subr.bf16.mxu0 0
    %523 = vmatpush2.bf16.msra.mxu0 0
    %524 = vmatprep.subr.bf16.mxu0 0
    %525 = vmatpush2.bf16.msra.mxu0 0
    %526 = vmatprep.subr.bf16.mxu0 0
    %527 = vmatpush2.bf16.msra.mxu0 0
    %528 = vmatprep.mubr.bf16.mxu0 0
    %529 = vmatmul.mubr.bf16.gmra.mxu0 %v490
    %v530 = vpop.f32.mrf.mxu0
    %v531 = vadd.f32 0.0, %v530
    %v532 = vpop.f32.mrf.mxu0
    %v533 = vpop.f32.mrf.mxu0
    %v534 = vpop.f32.mrf.mxu0
    %535 = vdwg.mxu0
    %536 = vrot.lane.b32.xlu0 %v238, 64
    %v537 = vpop.permute.xlu0 %536
    %v539 = vsel %vm438, %v484, 0
    %v542 = vsel %vm492, %v537, 0
    %544 = vmatprep.subr.bf16.mxu0 0
    %545 = vmatpush1.bf16.msra.mxu0 0
    %546 = vmatprep.subr.bf16.mxu0 0
    %547 = vmatpush1.bf16.msra.mxu0 0
    %548 = vmatprep.subr.bf16.mxu0 0
    %549 = vmatpush1.bf16.msra.mxu0 0
    %550 = vmatprep.subr.bf16.mxu0 0
    %551 = vmatpush1.bf16.msra.mxu0 0
    %552 = vmatprep.subr.bf16.mxu0 0
    %553 = vmatpush1.bf16.msra.mxu0 0
    %554 = vmatprep.subr.bf16.mxu0 0
    %555 = vmatpush1.bf16.msra.mxu0 0
    %556 = vmatprep.subr.bf16.mxu0 0
    %557 = vmatpush1.bf16.msra.mxu0 0
    %558 = vmatprep.subr.bf16.mxu0 0
    %559 = vmatpush1.bf16.msra.mxu0 %v542
    %560 = vmatprep.subr.bf16.mxu0 0
    %561 = vmatpush2.bf16.msra.mxu0 0
    %562 = vmatprep.subr.bf16.mxu0 0
    %563 = vmatpush2.bf16.msra.mxu0 0
    %564 = vmatprep.subr.bf16.mxu0 0
    %565 = vmatpush2.bf16.msra.mxu0 0
    %566 = vmatprep.subr.bf16.mxu0 0
    %567 = vmatpush2.bf16.msra.mxu0 0
    %568 = vmatprep.subr.bf16.mxu0 0
    %569 = vmatpush2.bf16.msra.mxu0 0
    %570 = vmatprep.subr.bf16.mxu0 0
    %571 = vmatpush2.bf16.msra.mxu0 0
    %572 = vmatprep.subr.bf16.mxu0 0
    %573 = vmatpush2.bf16.msra.mxu0 0
    %574 = vmatprep.subr.bf16.mxu0 0
    %575 = vmatpush2.bf16.msra.mxu0 0
    %576 = vmatprep.mubr.bf16.mxu0 0
    %577 = vmatmul.mubr.bf16.gmra.mxu0 %v539
    %v578 = vpop.f32.mrf.mxu0
    %v579 = vadd.f32 0.0, %v578
    %v580 = vpop.f32.mrf.mxu0
    %v581 = vpop.f32.mrf.mxu0
    %v582 = vpop.f32.mrf.mxu0
    %583 = vdwg.mxu0
    %584 = vrot.lane.b32.xlu0 %v239, 64
    %v585 = vpop.permute.xlu0 %584
    %v587 = vsel %vm438, %v485, 0
    %v590 = vsel %vm492, %v585, 0
    %592 = vmatprep.subr.bf16.mxu0 0
    %593 = vmatpush1.bf16.msra.mxu0 0
    %594 = vmatprep.subr.bf16.mxu0 0
    %595 = vmatpush1.bf16.msra.mxu0 0
    %596 = vmatprep.subr.bf16.mxu0 0
    %597 = vmatpush1.bf16.msra.mxu0 0
    %598 = vmatprep.subr.bf16.mxu0 0
    %599 = vmatpush1.bf16.msra.mxu0 0
    %600 = vmatprep.subr.bf16.mxu0 0
    %601 = vmatpush1.bf16.msra.mxu0 0
    %602 = vmatprep.subr.bf16.mxu0 0
    %603 = vmatpush1.bf16.msra.mxu0 0
    %604 = vmatprep.subr.bf16.mxu0 0
    %605 = vmatpush1.bf16.msra.mxu0 0
    %606 = vmatprep.subr.bf16.mxu0 0
    %607 = vmatpush1.bf16.msra.mxu0 %v590
    %608 = vmatprep.subr.bf16.mxu0 0
    %609 = vmatpush2.bf16.msra.mxu0 0
    %610 = vmatprep.subr.bf16.mxu0 0
    %611 = vmatpush2.bf16.msra.mxu0 0
    %612 = vmatprep.subr.bf16.mxu0 0
    %613 = vmatpush2.bf16.msra.mxu0 0
    %614 = vmatprep.subr.bf16.mxu0 0
    %615 = vmatpush2.bf16.msra.mxu0 0
    %616 = vmatprep.subr.bf16.mxu0 0
    %617 = vmatpush2.bf16.msra.mxu0 0
    %618 = vmatprep.subr.bf16.mxu0 0
    %619 = vmatpush2.bf16.msra.mxu0 0
    %620 = vmatprep.subr.bf16.mxu0 0
    %621 = vmatpush2.bf16.msra.mxu0 0
    %622 = vmatprep.subr.bf16.mxu0 0
    %623 = vmatpush2.bf16.msra.mxu0 0
    %624 = vmatprep.mubr.bf16.mxu0 0
    %625 = vmatmul.mubr.bf16.gmra.mxu0 %v587
    %v626 = vpop.f32.mrf.mxu0
    %v627 = vadd.f32 0.0, %v626
    %v628 = vpop.f32.mrf.mxu0
    %v629 = vpop.f32.mrf.mxu0
    %v630 = vpop.f32.mrf.mxu0
    %631 = vdwg.mxu0
    %632 = vrot.lane.b32.xlu0 %v240, 64
    %v633 = vpop.permute.xlu0 %632
    %v635 = vsel %vm438, %v486, 0
    %v638 = vsel %vm492, %v633, 0
    %640 = vmatprep.subr.bf16.mxu0 0
    %641 = vmatpush1.bf16.msra.mxu0 0
    %642 = vmatprep.subr.bf16.mxu0 0
    %643 = vmatpush1.bf16.msra.mxu0 0
    %644 = vmatprep.subr.bf16.mxu0 0
    %645 = vmatpush1.bf16.msra.mxu0 0
    %646 = vmatprep.subr.bf16.mxu0 0
    %647 = vmatpush1.bf16.msra.mxu0 0
    %648 = vmatprep.subr.bf16.mxu0 0
    %649 = vmatpush1.bf16.msra.mxu0 0
    %650 = vmatprep.subr.bf16.mxu0 0
    %651 = vmatpush1.bf16.msra.mxu0 0
    %652 = vmatprep.subr.bf16.mxu0 0
    %653 = vmatpush1.bf16.msra.mxu0 0
    %654 = vmatprep.subr.bf16.mxu0 0
    %655 = vmatpush1.bf16.msra.mxu0 %v638
    %656 = vmatprep.subr.bf16.mxu0 0
    %657 = vmatpush2.bf16.msra.mxu0 0
    %658 = vmatprep.subr.bf16.mxu0 0
    %659 = vmatpush2.bf16.msra.mxu0 0
    %660 = vmatprep.subr.bf16.mxu0 0
    %661 = vmatpush2.bf16.msra.mxu0 0
    %662 = vmatprep.subr.bf16.mxu0 0
    %663 = vmatpush2.bf16.msra.mxu0 0
    %664 = vmatprep.subr.bf16.mxu0 0
    %665 = vmatpush2.bf16.msra.mxu0 0
    %666 = vmatprep.subr.bf16.mxu0 0
    %667 = vmatpush2.bf16.msra.mxu0 0
    %668 = vmatprep.subr.bf16.mxu0 0
    %669 = vmatpush2.bf16.msra.mxu0 0
    %670 = vmatprep.subr.bf16.mxu0 0
    %671 = vmatpush2.bf16.msra.mxu0 0
    %672 = vmatprep.mubr.bf16.mxu0 0
    %673 = vmatmul.mubr.bf16.gmra.mxu0 %v635
    %v674 = vpop.f32.mrf.mxu0
    %v675 = vadd.f32 0.0, %v674
    %v676 = vpop.f32.mrf.mxu0
    %v677 = vpop.f32.mrf.mxu0
    %v678 = vpop.f32.mrf.mxu0
    %679 = vdwg.mxu0
    %682 = vrot.lane.b32.xlu0 %v627, 16
    %v683 = vpop.permute.xlu0 %682
    %684 = vrot.lane.b32.xlu0 %v675, 16
    %v685 = vpop.permute.xlu0 %684
    %v688 = vsel %vm244, %v531, %v683
    %v689 = vsel %vm244, %v579, %v685
    %v690 = vpack.c.bf16 %v689, %v688
    %v691 = vld [vmem:[%s6] sm:$0xf]
    %v692 = vld [vmem:[%s6 + $0x4] sm:$0xf]
    %v693 = vld [vmem:[%s6 + $0x8] sm:$0xf]
    %v694 = vld [vmem:[%s6 + $0xc] sm:$0xf]
    %v699 = vunpack.c.l.b16 %v691
    %v700 = vunpack.c.l.b16 %v692
    %v701 = vunpack.c.l.b16 %v693
    %v702 = vunpack.c.l.b16 %v694
    %v703 = vpack.c.b16 %v700, %v699
    %v704 = vpack.c.b16 %v702, %v701
    %v708 = vsel %vm121, %v690, 0
    %710 = vmatprep.subr.bf16.mxu0 0
    %711 = vmatpush1.bf16.msra.mxu0 0
    %712 = vmatprep.subr.bf16.mxu0 0
    %713 = vmatpush1.bf16.msra.mxu0 0
    %714 = vmatprep.subr.bf16.mxu0 0
    %715 = vmatpush1.bf16.msra.mxu0 0
    %716 = vmatprep.subr.bf16.mxu0 0
    %717 = vmatpush1.bf16.msra.mxu0 0
    %718 = vmatprep.subr.bf16.mxu0 0
    %719 = vmatpush1.bf16.msra.mxu0 0
    %720 = vmatprep.subr.bf16.mxu0 0
    %721 = vmatpush1.bf16.msra.mxu0 0
    %722 = vmatprep.subr.bf16.mxu0 0
    %723 = vmatpush1.bf16.msra.mxu0 %v704
    %724 = vmatprep.subr.bf16.mxu0 0
    %725 = vmatpush1.bf16.msra.mxu0 %v703
    %726 = vmatprep.subr.bf16.mxu0 0
    %727 = vmatpush2.bf16.msra.mxu0 0
    %728 = vmatprep.subr.bf16.mxu0 0
    %729 = vmatpush2.bf16.msra.mxu0 0
    %730 = vmatprep.subr.bf16.mxu0 0
    %731 = vmatpush2.bf16.msra.mxu0 0
    %732 = vmatprep.subr.bf16.mxu0 0
    %733 = vmatpush2.bf16.msra.mxu0 0
    %734 = vmatprep.subr.bf16.mxu0 0
    %735 = vmatpush2.bf16.msra.mxu0 0
    %736 = vmatprep.subr.bf16.mxu0 0
    %737 = vmatpush2.bf16.msra.mxu0 0
    %738 = vmatprep.subr.bf16.mxu0 0
    %739 = vmatpush2.bf16.msra.mxu0 0
    %740 = vmatprep.subr.bf16.mxu0 0
    %741 = vmatpush2.bf16.msra.mxu0 0
    %742 = vmatprep.mubr.bf16.mxu0 0
    %743 = vmatmul.mubr.bf16.gmra.mxu0 %v708
    %v744 = vpop.f32.mrf.mxu0
    %v745 = vadd.f32 0.0, %v744
    %v746 = vpop.f32.mrf.mxu0
    %v747 = vpop.f32.mrf.mxu0
    %v748 = vadd.f32 0.0, %v747
    %v749 = vpop.f32.mrf.mxu0
    %750 = vdwg.mxu0
    %v751 = vadd.f32 %v112, %v745
    %v752 = vadd.f32 %v113, %v748
    %v753 = vlaneseq
    %v754 = vshrl.u32 %v753, 7
    %v755 = vsub.s32 4, %v754
    %v756 = vrot.slane %v120, %v755
    %v757 = vadd.f32 %v751, %v756
    %v758 = vadd.f32 %v752, %v756
    %v759 = vsel %vm121, %v757, 0.0
    %760 = vadd.xlane.f32.xlu0 %v759
    %v761 = vpop.xlane.xlu0 %760
    %v762 = vsel %vm121, %v758, 0.0
    %763 = vadd.xlane.f32.xlu0 %v762
    %v764 = vpop.xlane.xlu0 %763
    %v765 = vmul.f32 %v761, %v128
    %v766 = vmul.f32 %v764, %v128
    %v767 = vsub.f32 %v757, %v765
    %v768 = vsub.f32 %v758, %v766
    %v769 = vmul.f32 %v767, %v767
    %v770 = vmul.f32 %v768, %v768
    %v771 = vsel %vm121, %v769, 0.0
    %772 = vadd.xlane.f32.xlu0 %v771
    %v773 = vpop.xlane.xlu0 %772
    %v774 = vsel %vm121, %v770, 0.0
    %775 = vadd.xlane.f32.xlu0 %v774
    %v776 = vpop.xlane.xlu0 %775
    %v777 = vmul.f32 %v773, %v128
    %v778 = vmul.f32 %v776, %v128
    %v779 = vadd.f32 %v777, 1e-05
    %v780 = vadd.f32 %v778, 1e-05
    %v781 = vrsqrt.pop %v779
    %v782 = vrsqrt.pop %v780
    %v783 = vmul.f32 %v767, %v781
    %v784 = vmul.f32 %v768, %v782
    %v785 = vlaneseq
    %v786 = vshrl.u32 %v785, 7
    %v787 = vsub.s32 2, %v786
    %v788 = vrot.slane %v120, %v787
    %v789 = vmul.f32 %v783, %v788
    %v790 = vmul.f32 %v784, %v788
    %v791 = vlaneseq
    %v792 = vshrl.u32 %v791, 7
    %v793 = vsub.s32 3, %v792
    %v794 = vrot.slane %v120, %v793
    %v795 = vadd.f32 %v789, %v794
    %v796 = vadd.f32 %v790, %v794
    %v797 = vpack.c.bf16 %v796, %v795
    %v798 = vld [vmem:[%s9] sm:$0xf]
    %v799 = vld [vmem:[%s9 + $0x4] sm:$0xf]
    %v800 = vld [vmem:[%s9 + $0x8] sm:$0xf]
    %v801 = vld [vmem:[%s9 + $0xc] sm:$0xf]
    %v802 = vld [vmem:[%s10] sm:$0x1]
    %v804 = vlaneseq
    %v805 = vshrl.u32 %v804, 7
    %v806 = vsub.s32 0, %v805
    %v807 = vrot.slane %v802, %v806
    %v813 = vunpack.c.l.b16 %v798
    %v814 = vunpack.c.l.b16 %v799
    %v815 = vunpack.c.l.b16 %v800
    %v816 = vunpack.c.l.b16 %v801
    %v817 = vpack.c.b16 %v814, %v813
    %v818 = vpack.c.b16 %v816, %v815
    %v822 = vsel %vm121, %v797, 0
    %824 = vmatprep.subr.bf16.mxu0 0
    %825 = vmatpush1.bf16.msra.mxu0 0
    %826 = vmatprep.subr.bf16.mxu0 0
    %827 = vmatpush1.bf16.msra.mxu0 0
    %828 = vmatprep.subr.bf16.mxu0 0
    %829 = vmatpush1.bf16.msra.mxu0 0
    %830 = vmatprep.subr.bf16.mxu0 0
    %831 = vmatpush1.bf16.msra.mxu0 0
    %832 = vmatprep.subr.bf16.mxu0 0
    %833 = vmatpush1.bf16.msra.mxu0 0
    %834 = vmatprep.subr.bf16.mxu0 0
    %835 = vmatpush1.bf16.msra.mxu0 0
    %836 = vmatprep.subr.bf16.mxu0 0
    %837 = vmatpush1.bf16.msra.mxu0 %v818
    %838 = vmatprep.subr.bf16.mxu0 0
    %839 = vmatpush1.bf16.msra.mxu0 %v817
    %840 = vmatprep.subr.bf16.mxu0 0
    %841 = vmatpush2.bf16.msra.mxu0 0
    %842 = vmatprep.subr.bf16.mxu0 0
    %843 = vmatpush2.bf16.msra.mxu0 0
    %844 = vmatprep.subr.bf16.mxu0 0
    %845 = vmatpush2.bf16.msra.mxu0 0
    %846 = vmatprep.subr.bf16.mxu0 0
    %847 = vmatpush2.bf16.msra.mxu0 0
    %848 = vmatprep.subr.bf16.mxu0 0
    %849 = vmatpush2.bf16.msra.mxu0 0
    %850 = vmatprep.subr.bf16.mxu0 0
    %851 = vmatpush2.bf16.msra.mxu0 0
    %852 = vmatprep.subr.bf16.mxu0 0
    %853 = vmatpush2.bf16.msra.mxu0 0
    %854 = vmatprep.subr.bf16.mxu0 0
    %855 = vmatpush2.bf16.msra.mxu0 0
    %856 = vmatprep.mubr.bf16.mxu0 0
    %857 = vmatmul.mubr.bf16.gmra.mxu0 %v822
    %v858 = vpop.f32.mrf.mxu0
    %v859 = vadd.f32 %v807, %v858
    %v860 = vpop.f32.mrf.mxu0
    %v861 = vpop.f32.mrf.mxu0
    %v862 = vadd.f32 %v807, %v861
    %v863 = vpop.f32.mrf.mxu0
    %864 = vdwg.mxu0
    %v865 = vmul.f32 %v859, 0.5
    %v866 = vmul.f32 %v862, 0.5
    %v867 = vmul.f32 %v859, 0.044715
    %v868 = vmul.f32 %v862, 0.044715
    %v869 = vmul.f32 %v867, %v859
    %v870 = vmul.f32 %v868, %v862
    %v871 = vmul.f32 %v869, %v859
    %v872 = vmul.f32 %v870, %v862
    %v873 = vadd.f32 %v859, %v871
    %v874 = vadd.f32 %v862, %v872
    %v875 = vmul.f32 %v873, 0.7978846
    %v876 = vmul.f32 %v874, 0.7978846
    %v877 = vtanh.pop %v875
    %v878 = vtanh.pop %v876
    %v879 = vadd.f32 %v877, 1.0
    %v880 = vadd.f32 %v878, 1.0
    %v881 = vmul.f32 %v865, %v879
    %v882 = vmul.f32 %v866, %v880
    %v883 = vpack.c.bf16 %v882, %v881
    %v884 = vld [vmem:[%s11] sm:$0xf]
    %v885 = vld [vmem:[%s11 + $0x4] sm:$0xf]
    %v886 = vld [vmem:[%s11 + $0x8] sm:$0xf]
    %v887 = vld [vmem:[%s11 + $0xc] sm:$0xf]
    %v888 = vld [vmem:[%s11 + $0x10] sm:$0xf]
    %v889 = vld [vmem:[%s11 + $0x14] sm:$0xf]
    %v890 = vld [vmem:[%s11 + $0x18] sm:$0xf]
    %v891 = vld [vmem:[%s11 + $0x1c] sm:$0xf]
    %v892 = vld [vmem:[%s11 + $0x20] sm:$0xf]
    %v893 = vld [vmem:[%s11 + $0x24] sm:$0xf]
    %v894 = vld [vmem:[%s11 + $0x28] sm:$0xf]
    %v895 = vld [vmem:[%s11 + $0x2c] sm:$0xf]
    %v896 = vld [vmem:[%s11 + $0x30] sm:$0xf]
    %v897 = vld [vmem:[%s11 + $0x34] sm:$0xf]
    %v898 = vld [vmem:[%s11 + $0x38] sm:$0xf]
    %v899 = vld [vmem:[%s11 + $0x3c] sm:$0xf]
    %v916 = vunpack.c.l.b16 %v884
    %v917 = vunpack.c.l.b16 %v885
    %v918 = vunpack.c.l.b16 %v886
    %v919 = vunpack.c.l.b16 %v887
    %v920 = vunpack.c.l.b16 %v888
    %v921 = vunpack.c.l.b16 %v889
    %v922 = vunpack.c.l.b16 %v890
    %v923 = vunpack.c.l.b16 %v891
    %v924 = vunpack.c.l.b16 %v892
    %v925 = vunpack.c.l.b16 %v893
    %v926 = vunpack.c.l.b16 %v894
    %v927 = vunpack.c.l.b16 %v895
    %v928 = vunpack.c.l.b16 %v896
    %v929 = vunpack.c.l.b16 %v897
    %v930 = vunpack.c.l.b16 %v898
    %v931 = vunpack.c.l.b16 %v899
    %v932 = vpack.c.b16 %v917, %v916
    %v933 = vpack.c.b16 %v919, %v918
    %v934 = vpack.c.b16 %v921, %v920
    %v935 = vpack.c.b16 %v923, %v922
    %v936 = vpack.c.b16 %v925, %v924
    %v937 = vpack.c.b16 %v927, %v926
    %v938 = vpack.c.b16 %v929, %v928
    %v939 = vpack.c.b16 %v931, %v930
    %948 = vmatprep.subr.bf16.mxu0 0
    %949 = vmatpush1.bf16.msra.mxu0 %v939
    %950 = vmatprep.subr.bf16.mxu0 0
    %951 = vmatpush1.bf16.msra.mxu0 %v938
    %952 = vmatprep.subr.bf16.mxu0 0
    %953 = vmatpush1.bf16.msra.mxu0 %v937
    %954 = vmatprep.subr.bf16.mxu0 0
    %955 = vmatpush1.bf16.msra.mxu0 %v936
    %956 = vmatprep.subr.bf16.mxu0 0
    %957 = vmatpush1.bf16.msra.mxu0 %v935
    %958 = vmatprep.subr.bf16.mxu0 0
    %959 = vmatpush1.bf16.msra.mxu0 %v934
    %960 = vmatprep.subr.bf16.mxu0 0
    %961 = vmatpush1.bf16.msra.mxu0 %v933
    %962 = vmatprep.subr.bf16.mxu0 0
    %963 = vmatpush1.bf16.msra.mxu0 %v932
    %964 = vmatprep.subr.bf16.mxu0 0
    %965 = vmatpush2.bf16.msra.mxu0 0
    %966 = vmatprep.subr.bf16.mxu0 0
    %967 = vmatpush2.bf16.msra.mxu0 0
    %968 = vmatprep.subr.bf16.mxu0 0
    %969 = vmatpush2.bf16.msra.mxu0 0
    %970 = vmatprep.subr.bf16.mxu0 0
    %971 = vmatpush2.bf16.msra.mxu0 0
    %972 = vmatprep.subr.bf16.mxu0 0
    %973 = vmatpush2.bf16.msra.mxu0 0
    %974 = vmatprep.subr.bf16.mxu0 0
    %975 = vmatpush2.bf16.msra.mxu0 0
    %976 = vmatprep.subr.bf16.mxu0 0
    %977 = vmatpush2.bf16.msra.mxu0 0
    %978 = vmatprep.subr.bf16.mxu0 0
    %979 = vmatpush2.bf16.msra.mxu0 0
    %980 = vmatprep.mubr.bf16.mxu0 0
    %981 = vmatmul.mubr.bf16.gmra.mxu0 %v883
    %v982 = vpop.f32.mrf.mxu0
    %v983 = vadd.f32 0.0, %v982
    %v984 = vpop.f32.mrf.mxu0
    %v985 = vpop.f32.mrf.mxu0
    %v986 = vadd.f32 0.0, %v985
    %v987 = vpop.f32.mrf.mxu0
    %988 = vdwg.mxu0
    %v989 = vadd.f32 %v757, %v983
    %v990 = vadd.f32 %v758, %v986
    %v991 = vlaneseq
    %v992 = vshrl.u32 %v991, 7
    %v993 = vsub.s32 5, %v992
    %v994 = vrot.slane %v120, %v993
    %v995 = vadd.f32 %v989, %v994
    %v996 = vadd.f32 %v990, %v994
    %s997 = scalar_lea.vmem %s7, 8
    %v998 = vld [vmem:[%s997] sm:$0x3f]
    %v999 = vsel %vm121, %v995, 0.0
    %1000 = vadd.xlane.f32.xlu0 %v999
    %v1001 = vpop.xlane.xlu0 %1000
    %v1002 = vsel %vm121, %v996, 0.0
    %1003 = vadd.xlane.f32.xlu0 %v1002
    %v1004 = vpop.xlane.xlu0 %1003
    %v1005 = vmul.f32 %v1001, %v128
    %v1006 = vmul.f32 %v1004, %v128
    %v1007 = vsub.f32 %v995, %v1005
    %v1008 = vsub.f32 %v996, %v1006
    %v1009 = vmul.f32 %v1007, %v1007
    %v1010 = vmul.f32 %v1008, %v1008
    %v1011 = vsel %vm121, %v1009, 0.0
    %1012 = vadd.xlane.f32.xlu0 %v1011
    %v1013 = vpop.xlane.xlu0 %1012
    %v1014 = vsel %vm121, %v1010, 0.0
    %1015 = vadd.xlane.f32.xlu0 %v1014
    %v1016 = vpop.xlane.xlu0 %1015
    %v1017 = vmul.f32 %v1013, %v128
    %v1018 = vmul.f32 %v1016, %v128
    %v1019 = vadd.f32 %v1017, 1e-05
    %v1020 = vadd.f32 %v1018, 1e-05
    %v1021 = vrsqrt.pop %v1019
    %v1022 = vrsqrt.pop %v1020
    %v1023 = vmul.f32 %v1007, %v1021
    %v1024 = vmul.f32 %v1008, %v1022
    %v1025 = vlaneseq
    %v1026 = vshrl.u32 %v1025, 7
    %v1027 = vsub.s32 0, %v1026
    %v1028 = vrot.slane %v998, %v1027
    %v1029 = vmul.f32 %v1023, %v1028
    %v1030 = vmul.f32 %v1024, %v1028
    %v1031 = vlaneseq
    %v1032 = vshrl.u32 %v1031, 7
    %v1033 = vsub.s32 1, %v1032
    %v1034 = vrot.slane %v998, %v1033
    %v1035 = vadd.f32 %v1029, %v1034
    %v1036 = vadd.f32 %v1030, %v1034
    %v1037 = vpack.c.bf16 %v1036, %v1035
    %s1038 = scalar_lea.vmem %s4, 16
    %v1039 = vld [vmem:[%s1038] sm:$0xf]
    %v1040 = vld [vmem:[%s1038 + $0x4] sm:$0xf]
    %v1041 = vld [vmem:[%s1038 + $0x8] sm:$0xf]
    %v1042 = vld [vmem:[%s1038 + $0xc] sm:$0xf]
    %s1043 = scalar_lea.vmem %s5, 1
    %v1044 = vld [vmem:[%s1043] sm:$0x1]
    %v1046 = vlaneseq
    %v1047 = vshrl.u32 %v1046, 7
    %v1048 = vsub.s32 0, %v1047
    %v1049 = vrot.slane %v1044, %v1048
    %v1055 = vunpack.c.l.b16 %v1039
    %v1056 = vunpack.c.l.b16 %v1040
    %v1057 = vunpack.c.l.b16 %v1041
    %v1058 = vunpack.c.l.b16 %v1042
    %v1059 = vpack.c.b16 %v1056, %v1055
    %v1060 = vpack.c.b16 %v1058, %v1057
    %v1064 = vsel %vm121, %v1037, 0
    %1066 = vmatprep.subr.bf16.mxu0 0
    %1067 = vmatpush1.bf16.msra.mxu0 0
    %1068 = vmatprep.subr.bf16.mxu0 0
    %1069 = vmatpush1.bf16.msra.mxu0 0
    %1070 = vmatprep.subr.bf16.mxu0 0
    %1071 = vmatpush1.bf16.msra.mxu0 0
    %1072 = vmatprep.subr.bf16.mxu0 0
    %1073 = vmatpush1.bf16.msra.mxu0 0
    %1074 = vmatprep.subr.bf16.mxu0 0
    %1075 = vmatpush1.bf16.msra.mxu0 0
    %1076 = vmatprep.subr.bf16.mxu0 0
    %1077 = vmatpush1.bf16.msra.mxu0 0
    %1078 = vmatprep.subr.bf16.mxu0 0
    %1079 = vmatpush1.bf16.msra.mxu0 %v1060
    %1080 = vmatprep.subr.bf16.mxu0 0
    %1081 = vmatpush1.bf16.msra.mxu0 %v1059
    %1082 = vmatprep.subr.bf16.mxu0 0
    %1083 = vmatpush2.bf16.msra.mxu0 0
    %1084 = vmatprep.subr.bf16.mxu0 0
    %1085 = vmatpush2.bf16.msra.mxu0 0
    %1086 = vmatprep.subr.bf16.mxu0 0
    %1087 = vmatpush2.bf16.msra.mxu0 0
    %1088 = vmatprep.subr.bf16.mxu0 0
    %1089 = vmatpush2.bf16.msra.mxu0 0
    %1090 = vmatprep.subr.bf16.mxu0 0
    %1091 = vmatpush2.bf16.msra.mxu0 0
    %1092 = vmatprep.subr.bf16.mxu0 0
    %1093 = vmatpush2.bf16.msra.mxu0 0
    %1094 = vmatprep.subr.bf16.mxu0 0
    %1095 = vmatpush2.bf16.msra.mxu0 0
    %1096 = vmatprep.subr.bf16.mxu0 0
    %1097 = vmatpush2.bf16.msra.mxu0 0
    %1098 = vmatprep.mubr.bf16.mxu0 0
    %1099 = vmatmul.mubr.bf16.gmra.mxu0 %v1064
    %v1100 = vpop.f32.mrf.mxu0
    %v1101 = vadd.f32 %v1049, %v1100
    %v1102 = vpop.f32.mrf.mxu0
    %v1103 = vpop.f32.mrf.mxu0
    %v1104 = vadd.f32 %v1049, %v1103
    %v1105 = vpop.f32.mrf.mxu0
    %1106 = vdwg.mxu0
    %1109 = vrot.lane.b32.xlu0 %v1101, 112
    %v1110 = vpop.permute.xlu0 %1109
    %1111 = vrot.lane.b32.xlu0 %v1104, 112
    %v1112 = vpop.permute.xlu0 %1111
    %v1115 = vpack.c.bf16 %v1101, %v1101
    %v1116 = vpack.c.bf16 %v1104, %v1104
    %v1117 = vpack.c.bf16 %v1110, %v1110
    %v1118 = vpack.c.bf16 %v1112, %v1112
    %1120 = vrot.lane.b32.xlu0 %v1115, 96
    %v1121 = vpop.permute.xlu0 %1120
    %v1123 = vsel %vm244, %v1115, 0
    %v1126 = vsel %vm244, %v1121, 0
    %1128 = vmatprep.subr.bf16.mxu0 0
    %1129 = vmatpush1.bf16.xpose.msra.mxu0 0
    %1130 = vmatprep.subr.bf16.mxu0 0
    %1131 = vmatpush1.bf16.xpose.msra.mxu0 0
    %1132 = vmatprep.subr.bf16.mxu0 0
    %1133 = vmatpush1.bf16.xpose.msra.mxu0 0
    %1134 = vmatprep.subr.bf16.mxu0 0
    %1135 = vmatpush1.bf16.xpose.msra.mxu0 0
    %1136 = vmatprep.subr.bf16.mxu0 0
    %1137 = vmatpush1.bf16.xpose.msra.mxu0 0
    %1138 = vmatprep.subr.bf16.mxu0 0
    %1139 = vmatpush1.bf16.xpose.msra.mxu0 0
    %1140 = vmatprep.subr.bf16.mxu0 0
    %1141 = vmatpush1.bf16.xpose.msra.mxu0 0
    %1142 = vmatprep.subr.bf16.mxu0 0
    %1143 = vmatpush1.bf16.xpose.msra.mxu0 %v1126
    %1144 = vmatprep.subr.bf16.mxu0 0
    %1145 = vmatpush2.bf16.xpose.msra.mxu0 0
    %1146 = vmatprep.subr.bf16.mxu0 0
    %1147 = vmatpush2.bf16.xpose.msra.mxu0 0
    %1148 = vmatprep.subr.bf16.mxu0 0
    %1149 = vmatpush2.bf16.xpose.msra.mxu0 0
    %1150 = vmatprep.subr.bf16.mxu0 0
    %1151 = vmatpush2.bf16.xpose.msra.mxu0 0
    %1152 = vmatprep.subr.bf16.mxu0 0
    %1153 = vmatpush2.bf16.xpose.msra.mxu0 0
    %1154 = vmatprep.subr.bf16.mxu0 0
    %1155 = vmatpush2.bf16.xpose.msra.mxu0 0
    %1156 = vmatprep.subr.bf16.mxu0 0
    %1157 = vmatpush2.bf16.xpose.msra.mxu0 0
    %1158 = vmatprep.subr.bf16.mxu0 0
    %1159 = vmatpush2.bf16.xpose.msra.mxu0 0
    %1160 = vmatprep.mubr.bf16.mxu0 0
    %1161 = vmatmul.mubr.bf16.gmra.mxu0 %v1123
    %v1162 = vpop.f32.mrf.mxu0
    %v1163 = vadd.f32 %v119, %v1162
    %v1164 = vpop.f32.mrf.mxu0
    %v1165 = vpop.f32.mrf.mxu0
    %v1166 = vpop.f32.mrf.mxu0
    %1167 = vdwg.mxu0
    %1169 = vrot.lane.b32.xlu0 %v1116, 96
    %v1170 = vpop.permute.xlu0 %1169
    %v1172 = vsel %vm244, %v1116, 0
    %v1175 = vsel %vm244, %v1170, 0
    %1177 = vmatprep.subr.bf16.mxu0 0
    %1178 = vmatpush1.bf16.xpose.msra.mxu0 0
    %1179 = vmatprep.subr.bf16.mxu0 0
    %1180 = vmatpush1.bf16.xpose.msra.mxu0 0
    %1181 = vmatprep.subr.bf16.mxu0 0
    %1182 = vmatpush1.bf16.xpose.msra.mxu0 0
    %1183 = vmatprep.subr.bf16.mxu0 0
    %1184 = vmatpush1.bf16.xpose.msra.mxu0 0
    %1185 = vmatprep.subr.bf16.mxu0 0
    %1186 = vmatpush1.bf16.xpose.msra.mxu0 0
    %1187 = vmatprep.subr.bf16.mxu0 0
    %1188 = vmatpush1.bf16.xpose.msra.mxu0 0
    %1189 = vmatprep.subr.bf16.mxu0 0
    %1190 = vmatpush1.bf16.xpose.msra.mxu0 0
    %1191 = vmatprep.subr.bf16.mxu0 0
    %1192 = vmatpush1.bf16.xpose.msra.mxu0 %v1175
    %1193 = vmatprep.subr.bf16.mxu0 0
    %1194 = vmatpush2.bf16.xpose.msra.mxu0 0
    %1195 = vmatprep.subr.bf16.mxu0 0
    %1196 = vmatpush2.bf16.xpose.msra.mxu0 0
    %1197 = vmatprep.subr.bf16.mxu0 0
    %1198 = vmatpush2.bf16.xpose.msra.mxu0 0
    %1199 = vmatprep.subr.bf16.mxu0 0
    %1200 = vmatpush2.bf16.xpose.msra.mxu0 0
    %1201 = vmatprep.subr.bf16.mxu0 0
    %1202 = vmatpush2.bf16.xpose.msra.mxu0 0
    %1203 = vmatprep.subr.bf16.mxu0 0
    %1204 = vmatpush2.bf16.xpose.msra.mxu0 0
    %1205 = vmatprep.subr.bf16.mxu0 0
    %1206 = vmatpush2.bf16.xpose.msra.mxu0 0
    %1207 = vmatprep.subr.bf16.mxu0 0
    %1208 = vmatpush2.bf16.xpose.msra.mxu0 0
    %1209 = vmatprep.mubr.bf16.mxu0 0
    %1210 = vmatmul.mubr.bf16.gmra.mxu0 %v1172
    %v1211 = vpop.f32.mrf.mxu0
    %v1212 = vadd.f32 %v119, %v1211
    %v1213 = vpop.f32.mrf.mxu0
    %v1214 = vpop.f32.mrf.mxu0
    %v1215 = vpop.f32.mrf.mxu0
    %1216 = vdwg.mxu0
    %1218 = vrot.lane.b32.xlu0 %v1117, 96
    %v1219 = vpop.permute.xlu0 %1218
    %v1221 = vsel %vm244, %v1117, 0
    %v1224 = vsel %vm244, %v1219, 0
    %1226 = vmatprep.subr.bf16.mxu0 0
    %1227 = vmatpush1.bf16.xpose.msra.mxu0 0
    %1228 = vmatprep.subr.bf16.mxu0 0
    %1229 = vmatpush1.bf16.xpose.msra.mxu0 0
    %1230 = vmatprep.subr.bf16.mxu0 0
    %1231 = vmatpush1.bf16.xpose.msra.mxu0 0
    %1232 = vmatprep.subr.bf16.mxu0 0
    %1233 = vmatpush1.bf16.xpose.msra.mxu0 0
    %1234 = vmatprep.subr.bf16.mxu0 0
    %1235 = vmatpush1.bf16.xpose.msra.mxu0 0
    %1236 = vmatprep.subr.bf16.mxu0 0
    %1237 = vmatpush1.bf16.xpose.msra.mxu0 0
    %1238 = vmatprep.subr.bf16.mxu0 0
    %1239 = vmatpush1.bf16.xpose.msra.mxu0 0
    %1240 = vmatprep.subr.bf16.mxu0 0
    %1241 = vmatpush1.bf16.xpose.msra.mxu0 %v1224
    %1242 = vmatprep.subr.bf16.mxu0 0
    %1243 = vmatpush2.bf16.xpose.msra.mxu0 0
    %1244 = vmatprep.subr.bf16.mxu0 0
    %1245 = vmatpush2.bf16.xpose.msra.mxu0 0
    %1246 = vmatprep.subr.bf16.mxu0 0
    %1247 = vmatpush2.bf16.xpose.msra.mxu0 0
    %1248 = vmatprep.subr.bf16.mxu0 0
    %1249 = vmatpush2.bf16.xpose.msra.mxu0 0
    %1250 = vmatprep.subr.bf16.mxu0 0
    %1251 = vmatpush2.bf16.xpose.msra.mxu0 0
    %1252 = vmatprep.subr.bf16.mxu0 0
    %1253 = vmatpush2.bf16.xpose.msra.mxu0 0
    %1254 = vmatprep.subr.bf16.mxu0 0
    %1255 = vmatpush2.bf16.xpose.msra.mxu0 0
    %1256 = vmatprep.subr.bf16.mxu0 0
    %1257 = vmatpush2.bf16.xpose.msra.mxu0 0
    %1258 = vmatprep.mubr.bf16.mxu0 0
    %1259 = vmatmul.mubr.bf16.gmra.mxu0 %v1221
    %v1260 = vpop.f32.mrf.mxu0
    %v1261 = vadd.f32 %v119, %v1260
    %v1262 = vpop.f32.mrf.mxu0
    %v1263 = vpop.f32.mrf.mxu0
    %v1264 = vpop.f32.mrf.mxu0
    %1265 = vdwg.mxu0
    %1267 = vrot.lane.b32.xlu0 %v1118, 96
    %v1268 = vpop.permute.xlu0 %1267
    %v1270 = vsel %vm244, %v1118, 0
    %v1273 = vsel %vm244, %v1268, 0
    %1275 = vmatprep.subr.bf16.mxu0 0
    %1276 = vmatpush1.bf16.xpose.msra.mxu0 0
    %1277 = vmatprep.subr.bf16.mxu0 0
    %1278 = vmatpush1.bf16.xpose.msra.mxu0 0
    %1279 = vmatprep.subr.bf16.mxu0 0
    %1280 = vmatpush1.bf16.xpose.msra.mxu0 0
    %1281 = vmatprep.subr.bf16.mxu0 0
    %1282 = vmatpush1.bf16.xpose.msra.mxu0 0
    %1283 = vmatprep.subr.bf16.mxu0 0
    %1284 = vmatpush1.bf16.xpose.msra.mxu0 0
    %1285 = vmatprep.subr.bf16.mxu0 0
    %1286 = vmatpush1.bf16.xpose.msra.mxu0 0
    %1287 = vmatprep.subr.bf16.mxu0 0
    %1288 = vmatpush1.bf16.xpose.msra.mxu0 0
    %1289 = vmatprep.subr.bf16.mxu0 0
    %1290 = vmatpush1.bf16.xpose.msra.mxu0 %v1273
    %1291 = vmatprep.subr.bf16.mxu0 0
    %1292 = vmatpush2.bf16.xpose.msra.mxu0 0
    %1293 = vmatprep.subr.bf16.mxu0 0
    %1294 = vmatpush2.bf16.xpose.msra.mxu0 0
    %1295 = vmatprep.subr.bf16.mxu0 0
    %1296 = vmatpush2.bf16.xpose.msra.mxu0 0
    %1297 = vmatprep.subr.bf16.mxu0 0
    %1298 = vmatpush2.bf16.xpose.msra.mxu0 0
    %1299 = vmatprep.subr.bf16.mxu0 0
    %1300 = vmatpush2.bf16.xpose.msra.mxu0 0
    %1301 = vmatprep.subr.bf16.mxu0 0
    %1302 = vmatpush2.bf16.xpose.msra.mxu0 0
    %1303 = vmatprep.subr.bf16.mxu0 0
    %1304 = vmatpush2.bf16.xpose.msra.mxu0 0
    %1305 = vmatprep.subr.bf16.mxu0 0
    %1306 = vmatpush2.bf16.xpose.msra.mxu0 0
    %1307 = vmatprep.mubr.bf16.mxu0 0
    %1308 = vmatmul.mubr.bf16.gmra.mxu0 %v1270
    %v1309 = vpop.f32.mrf.mxu0
    %v1310 = vadd.f32 %v119, %v1309
    %v1311 = vpop.f32.mrf.mxu0
    %v1312 = vpop.f32.mrf.mxu0
    %v1313 = vpop.f32.mrf.mxu0
    %1314 = vdwg.mxu0
    %v1315 = vsel %vm438, %v1163, -inf
    %1316 = vmax.xlane.f32.xlu0 %v1315
    %v1317 = vpop.xlane.xlu0 %1316
    %v1318 = vsel %vm438, %v1212, -inf
    %1319 = vmax.xlane.f32.xlu0 %v1318
    %v1320 = vpop.xlane.xlu0 %1319
    %v1321 = vsel %vm438, %v1261, -inf
    %1322 = vmax.xlane.f32.xlu0 %v1321
    %v1323 = vpop.xlane.xlu0 %1322
    %v1324 = vsel %vm438, %v1310, -inf
    %1325 = vmax.xlane.f32.xlu0 %v1324
    %v1326 = vpop.xlane.xlu0 %1325
    %v1327 = vsub.f32 %v1163, %v1317
    %v1328 = vsub.f32 %v1212, %v1320
    %v1329 = vsub.f32 %v1261, %v1323
    %v1330 = vsub.f32 %v1310, %v1326
    %v1331 = vmul.f32 %v1327, 1.442695
    %v1332 = vpow.pop %v1331
    %v1333 = vmul.f32 %v1328, 1.442695
    %v1334 = vpow.pop %v1333
    %v1335 = vmul.f32 %v1329, 1.442695
    %v1336 = vpow.pop %v1335
    %v1337 = vmul.f32 %v1330, 1.442695
    %v1338 = vpow.pop %v1337
    %v1339 = vsel %vm438, %v1332, 0.0
    %1340 = vadd.xlane.f32.xlu0 %v1339
    %v1341 = vpop.xlane.xlu0 %1340
    %v1342 = vsel %vm438, %v1334, 0.0
    %1343 = vadd.xlane.f32.xlu0 %v1342
    %v1344 = vpop.xlane.xlu0 %1343
    %v1345 = vsel %vm438, %v1336, 0.0
    %1346 = vadd.xlane.f32.xlu0 %v1345
    %v1347 = vpop.xlane.xlu0 %1346
    %v1348 = vsel %vm438, %v1338, 0.0
    %1349 = vadd.xlane.f32.xlu0 %v1348
    %v1350 = vpop.xlane.xlu0 %1349
    %v1351 = vrcp.pop %v1341
    %v1352 = vrcp.pop %v1344
    %v1353 = vrcp.pop %v1347
    %v1354 = vrcp.pop %v1350
    %v1355 = vmul.f32 %v1332, %v1351
    %v1356 = vmul.f32 %v1334, %v1352
    %v1357 = vmul.f32 %v1336, %v1353
    %v1358 = vmul.f32 %v1338, %v1354
    %v1359 = vpack.c.bf16 %v1355, %v1355
    %v1360 = vpack.c.bf16 %v1356, %v1356
    %v1361 = vpack.c.bf16 %v1357, %v1357
    %v1362 = vpack.c.bf16 %v1358, %v1358
    %1363 = vrot.lane.b32.xlu0 %v1115, 64
    %v1364 = vpop.permute.xlu0 %1363
    %v1366 = vsel %vm438, %v1359, 0
    %v1369 = vsel %vm492, %v1364, 0
    %1371 = vmatprep.subr.bf16.mxu0 0
    %1372 = vmatpush1.bf16.msra.mxu0 0
    %1373 = vmatprep.subr.bf16.mxu0 0
    %1374 = vmatpush1.bf16.msra.mxu0 0
    %1375 = vmatprep.subr.bf16.mxu0 0
    %1376 = vmatpush1.bf16.msra.mxu0 0
    %1377 = vmatprep.subr.bf16.mxu0 0
    %1378 = vmatpush1.bf16.msra.mxu0 0
    %1379 = vmatprep.subr.bf16.mxu0 0
    %1380 = vmatpush1.bf16.msra.mxu0 0
    %1381 = vmatprep.subr.bf16.mxu0 0
    %1382 = vmatpush1.bf16.msra.mxu0 0
    %1383 = vmatprep.subr.bf16.mxu0 0
    %1384 = vmatpush1.bf16.msra.mxu0 0
    %1385 = vmatprep.subr.bf16.mxu0 0
    %1386 = vmatpush1.bf16.msra.mxu0 %v1369
    %1387 = vmatprep.subr.bf16.mxu0 0
    %1388 = vmatpush2.bf16.msra.mxu0 0
    %1389 = vmatprep.subr.bf16.mxu0 0
    %1390 = vmatpush2.bf16.msra.mxu0 0
    %1391 = vmatprep.subr.bf16.mxu0 0
    %1392 = vmatpush2.bf16.msra.mxu0 0
    %1393 = vmatprep.subr.bf16.mxu0 0
    %1394 = vmatpush2.bf16.msra.mxu0 0
    %1395 = vmatprep.subr.bf16.mxu0 0
    %1396 = vmatpush2.bf16.msra.mxu0 0
    %1397 = vmatprep.subr.bf16.mxu0 0
    %1398 = vmatpush2.bf16.msra.mxu0 0
    %1399 = vmatprep.subr.bf16.mxu0 0
    %1400 = vmatpush2.bf16.msra.mxu0 0
    %1401 = vmatprep.subr.bf16.mxu0 0
    %1402 = vmatpush2.bf16.msra.mxu0 0
    %1403 = vmatprep.mubr.bf16.mxu0 0
    %1404 = vmatmul.mubr.bf16.gmra.mxu0 %v1366
    %v1405 = vpop.f32.mrf.mxu0
    %v1406 = vadd.f32 0.0, %v1405
    %v1407 = vpop.f32.mrf.mxu0
    %v1408 = vpop.f32.mrf.mxu0
    %v1409 = vpop.f32.mrf.mxu0
    %1410 = vdwg.mxu0
    %1411 = vrot.lane.b32.xlu0 %v1116, 64
    %v1412 = vpop.permute.xlu0 %1411
    %v1414 = vsel %vm438, %v1360, 0
    %v1417 = vsel %vm492, %v1412, 0
    %1419 = vmatprep.subr.bf16.mxu0 0
    %1420 = vmatpush1.bf16.msra.mxu0 0
    %1421 = vmatprep.subr.bf16.mxu0 0
    %1422 = vmatpush1.bf16.msra.mxu0 0
    %1423 = vmatprep.subr.bf16.mxu0 0
    %1424 = vmatpush1.bf16.msra.mxu0 0
    %1425 = vmatprep.subr.bf16.mxu0 0
    %1426 = vmatpush1.bf16.msra.mxu0 0
    %1427 = vmatprep.subr.bf16.mxu0 0
    %1428 = vmatpush1.bf16.msra.mxu0 0
    %1429 = vmatprep.subr.bf16.mxu0 0
    %1430 = vmatpush1.bf16.msra.mxu0 0
    %1431 = vmatprep.subr.bf16.mxu0 0
    %1432 = vmatpush1.bf16.msra.mxu0 0
    %1433 = vmatprep.subr.bf16.mxu0 0
    %1434 = vmatpush1.bf16.msra.mxu0 %v1417
    %1435 = vmatprep.subr.bf16.mxu0 0
    %1436 = vmatpush2.bf16.msra.mxu0 0
    %1437 = vmatprep.subr.bf16.mxu0 0
    %1438 = vmatpush2.bf16.msra.mxu0 0
    %1439 = vmatprep.subr.bf16.mxu0 0
    %1440 = vmatpush2.bf16.msra.mxu0 0
    %1441 = vmatprep.subr.bf16.mxu0 0
    %1442 = vmatpush2.bf16.msra.mxu0 0
    %1443 = vmatprep.subr.bf16.mxu0 0
    %1444 = vmatpush2.bf16.msra.mxu0 0
    %1445 = vmatprep.subr.bf16.mxu0 0
    %1446 = vmatpush2.bf16.msra.mxu0 0
    %1447 = vmatprep.subr.bf16.mxu0 0
    %1448 = vmatpush2.bf16.msra.mxu0 0
    %1449 = vmatprep.subr.bf16.mxu0 0
    %1450 = vmatpush2.bf16.msra.mxu0 0
    %1451 = vmatprep.mubr.bf16.mxu0 0
    %1452 = vmatmul.mubr.bf16.gmra.mxu0 %v1414
    %v1453 = vpop.f32.mrf.mxu0
    %v1454 = vadd.f32 0.0, %v1453
    %v1455 = vpop.f32.mrf.mxu0
    %v1456 = vpop.f32.mrf.mxu0
    %v1457 = vpop.f32.mrf.mxu0
    %1458 = vdwg.mxu0
    %1459 = vrot.lane.b32.xlu0 %v1117, 64
    %v1460 = vpop.permute.xlu0 %1459
    %v1462 = vsel %vm438, %v1361, 0
    %v1465 = vsel %vm492, %v1460, 0
    %1467 = vmatprep.subr.bf16.mxu0 0
    %1468 = vmatpush1.bf16.msra.mxu0 0
    %1469 = vmatprep.subr.bf16.mxu0 0
    %1470 = vmatpush1.bf16.msra.mxu0 0
    %1471 = vmatprep.subr.bf16.mxu0 0
    %1472 = vmatpush1.bf16.msra.mxu0 0
    %1473 = vmatprep.subr.bf16.mxu0 0
    %1474 = vmatpush1.bf16.msra.mxu0 0
    %1475 = vmatprep.subr.bf16.mxu0 0
    %1476 = vmatpush1.bf16.msra.mxu0 0
    %1477 = vmatprep.subr.bf16.mxu0 0
    %1478 = vmatpush1.bf16.msra.mxu0 0
    %1479 = vmatprep.subr.bf16.mxu0 0
    %1480 = vmatpush1.bf16.msra.mxu0 0
    %1481 = vmatprep.subr.bf16.mxu0 0
    %1482 = vmatpush1.bf16.msra.mxu0 %v1465
    %1483 = vmatprep.subr.bf16.mxu0 0
    %1484 = vmatpush2.bf16.msra.mxu0 0
    %1485 = vmatprep.subr.bf16.mxu0 0
    %1486 = vmatpush2.bf16.msra.mxu0 0
    %1487 = vmatprep.subr.bf16.mxu0 0
    %1488 = vmatpush2.bf16.msra.mxu0 0
    %1489 = vmatprep.subr.bf16.mxu0 0
    %1490 = vmatpush2.bf16.msra.mxu0 0
    %1491 = vmatprep.subr.bf16.mxu0 0
    %1492 = vmatpush2.bf16.msra.mxu0 0
    %1493 = vmatprep.subr.bf16.mxu0 0
    %1494 = vmatpush2.bf16.msra.mxu0 0
    %1495 = vmatprep.subr.bf16.mxu0 0
    %1496 = vmatpush2.bf16.msra.mxu0 0
    %1497 = vmatprep.subr.bf16.mxu0 0
    %1498 = vmatpush2.bf16.msra.mxu0 0
    %1499 = vmatprep.mubr.bf16.mxu0 0
    %1500 = vmatmul.mubr.bf16.gmra.mxu0 %v1462
    %v1501 = vpop.f32.mrf.mxu0
    %v1502 = vadd.f32 0.0, %v1501
    %v1503 = vpop.f32.mrf.mxu0
    %v1504 = vpop.f32.mrf.mxu0
    %v1505 = vpop.f32.mrf.mxu0
    %1506 = vdwg.mxu0
    %1507 = vrot.lane.b32.xlu0 %v1118, 64
    %v1508 = vpop.permute.xlu0 %1507
    %v1510 = vsel %vm438, %v1362, 0
    %v1513 = vsel %vm492, %v1508, 0
    %1515 = vmatprep.subr.bf16.mxu0 0
    %1516 = vmatpush1.bf16.msra.mxu0 0
    %1517 = vmatprep.subr.bf16.mxu0 0
    %1518 = vmatpush1.bf16.msra.mxu0 0
    %1519 = vmatprep.subr.bf16.mxu0 0
    %1520 = vmatpush1.bf16.msra.mxu0 0
    %1521 = vmatprep.subr.bf16.mxu0 0
    %1522 = vmatpush1.bf16.msra.mxu0 0
    %1523 = vmatprep.subr.bf16.mxu0 0
    %1524 = vmatpush1.bf16.msra.mxu0 0
    %1525 = vmatprep.subr.bf16.mxu0 0
    %1526 = vmatpush1.bf16.msra.mxu0 0
    %1527 = vmatprep.subr.bf16.mxu0 0
    %1528 = vmatpush1.bf16.msra.mxu0 0
    %1529 = vmatprep.subr.bf16.mxu0 0
    %1530 = vmatpush1.bf16.msra.mxu0 %v1513
    %1531 = vmatprep.subr.bf16.mxu0 0
    %1532 = vmatpush2.bf16.msra.mxu0 0
    %1533 = vmatprep.subr.bf16.mxu0 0
    %1534 = vmatpush2.bf16.msra.mxu0 0
    %1535 = vmatprep.subr.bf16.mxu0 0
    %1536 = vmatpush2.bf16.msra.mxu0 0
    %1537 = vmatprep.subr.bf16.mxu0 0
    %1538 = vmatpush2.bf16.msra.mxu0 0
    %1539 = vmatprep.subr.bf16.mxu0 0
    %1540 = vmatpush2.bf16.msra.mxu0 0
    %1541 = vmatprep.subr.bf16.mxu0 0
    %1542 = vmatpush2.bf16.msra.mxu0 0
    %1543 = vmatprep.subr.bf16.mxu0 0
    %1544 = vmatpush2.bf16.msra.mxu0 0
    %1545 = vmatprep.subr.bf16.mxu0 0
    %1546 = vmatpush2.bf16.msra.mxu0 0
    %1547 = vmatprep.mubr.bf16.mxu0 0
    %1548 = vmatmul.mubr.bf16.gmra.mxu0 %v1510
    %v1549 = vpop.f32.mrf.mxu0
    %v1550 = vadd.f32 0.0, %v1549
    %v1551 = vpop.f32.mrf.mxu0
    %v1552 = vpop.f32.mrf.mxu0
    %v1553 = vpop.f32.mrf.mxu0
    %1554 = vdwg.mxu0
    %1557 = vrot.lane.b32.xlu0 %v1502, 16
    %v1558 = vpop.permute.xlu0 %1557
    %1559 = vrot.lane.b32.xlu0 %v1550, 16
    %v1560 = vpop.permute.xlu0 %1559
    %v1563 = vsel %vm244, %v1406, %v1558
    %v1564 = vsel %vm244, %v1454, %v1560
    %v1565 = vpack.c.bf16 %v1564, %v1563
    %s1566 = scalar_lea.vmem %s6, 16
    %v1567 = vld [vmem:[%s1566] sm:$0xf]
    %v1568 = vld [vmem:[%s1566 + $0x4] sm:$0xf]
    %v1569 = vld [vmem:[%s1566 + $0x8] sm:$0xf]
    %v1570 = vld [vmem:[%s1566 + $0xc] sm:$0xf]
    %v1575 = vunpack.c.l.b16 %v1567
    %v1576 = vunpack.c.l.b16 %v1568
    %v1577 = vunpack.c.l.b16 %v1569
    %v1578 = vunpack.c.l.b16 %v1570
    %v1579 = vpack.c.b16 %v1576, %v1575
    %v1580 = vpack.c.b16 %v1578, %v1577
    %v1584 = vsel %vm121, %v1565, 0
    %1586 = vmatprep.subr.bf16.mxu0 0
    %1587 = vmatpush1.bf16.msra.mxu0 0
    %1588 = vmatprep.subr.bf16.mxu0 0
    %1589 = vmatpush1.bf16.msra.mxu0 0
    %1590 = vmatprep.subr.bf16.mxu0 0
    %1591 = vmatpush1.bf16.msra.mxu0 0
    %1592 = vmatprep.subr.bf16.mxu0 0
    %1593 = vmatpush1.bf16.msra.mxu0 0
    %1594 = vmatprep.subr.bf16.mxu0 0
    %1595 = vmatpush1.bf16.msra.mxu0 0
    %1596 = vmatprep.subr.bf16.mxu0 0
    %1597 = vmatpush1.bf16.msra.mxu0 0
    %1598 = vmatprep.subr.bf16.mxu0 0
    %1599 = vmatpush1.bf16.msra.mxu0 %v1580
    %1600 = vmatprep.subr.bf16.mxu0 0
    %1601 = vmatpush1.bf16.msra.mxu0 %v1579
    %1602 = vmatprep.subr.bf16.mxu0 0
    %1603 = vmatpush2.bf16.msra.mxu0 0
    %1604 = vmatprep.subr.bf16.mxu0 0
    %1605 = vmatpush2.bf16.msra.mxu0 0
    %1606 = vmatprep.subr.bf16.mxu0 0
    %1607 = vmatpush2.bf16.msra.mxu0 0
    %1608 = vmatprep.subr.bf16.mxu0 0
    %1609 = vmatpush2.bf16.msra.mxu0 0
    %1610 = vmatprep.subr.bf16.mxu0 0
    %1611 = vmatpush2.bf16.msra.mxu0 0
    %1612 = vmatprep.subr.bf16.mxu0 0
    %1613 = vmatpush2.bf16.msra.mxu0 0
    %1614 = vmatprep.subr.bf16.mxu0 0
    %1615 = vmatpush2.bf16.msra.mxu0 0
    %1616 = vmatprep.subr.bf16.mxu0 0
    %1617 = vmatpush2.bf16.msra.mxu0 0
    %1618 = vmatprep.mubr.bf16.mxu0 0
    %1619 = vmatmul.mubr.bf16.gmra.mxu0 %v1584
    %v1620 = vpop.f32.mrf.mxu0
    %v1621 = vadd.f32 0.0, %v1620
    %v1622 = vpop.f32.mrf.mxu0
    %v1623 = vpop.f32.mrf.mxu0
    %v1624 = vadd.f32 0.0, %v1623
    %v1625 = vpop.f32.mrf.mxu0
    %1626 = vdwg.mxu0
    %v1627 = vadd.f32 %v995, %v1621
    %v1628 = vadd.f32 %v996, %v1624
    %v1629 = vlaneseq
    %v1630 = vshrl.u32 %v1629, 7
    %v1631 = vsub.s32 4, %v1630
    %v1632 = vrot.slane %v998, %v1631
    %v1633 = vadd.f32 %v1627, %v1632
    %v1634 = vadd.f32 %v1628, %v1632
    %v1635 = vsel %vm121, %v1633, 0.0
    %1636 = vadd.xlane.f32.xlu0 %v1635
    %v1637 = vpop.xlane.xlu0 %1636
    %v1638 = vsel %vm121, %v1634, 0.0
    %1639 = vadd.xlane.f32.xlu0 %v1638
    %v1640 = vpop.xlane.xlu0 %1639
    %v1641 = vmul.f32 %v1637, %v128
    %v1642 = vmul.f32 %v1640, %v128
    %v1643 = vsub.f32 %v1633, %v1641
    %v1644 = vsub.f32 %v1634, %v1642
    %v1645 = vmul.f32 %v1643, %v1643
    %v1646 = vmul.f32 %v1644, %v1644
    %v1647 = vsel %vm121, %v1645, 0.0
    %1648 = vadd.xlane.f32.xlu0 %v1647
    %v1649 = vpop.xlane.xlu0 %1648
    %v1650 = vsel %vm121, %v1646, 0.0
    %1651 = vadd.xlane.f32.xlu0 %v1650
    %v1652 = vpop.xlane.xlu0 %1651
    %v1653 = vmul.f32 %v1649, %v128
    %v1654 = vmul.f32 %v1652, %v128
    %v1655 = vadd.f32 %v1653, 1e-05
    %v1656 = vadd.f32 %v1654, 1e-05
    %v1657 = vrsqrt.pop %v1655
    %v1658 = vrsqrt.pop %v1656
    %v1659 = vmul.f32 %v1643, %v1657
    %v1660 = vmul.f32 %v1644, %v1658
    %v1661 = vlaneseq
    %v1662 = vshrl.u32 %v1661, 7
    %v1663 = vsub.s32 2, %v1662
    %v1664 = vrot.slane %v998, %v1663
    %v1665 = vmul.f32 %v1659, %v1664
    %v1666 = vmul.f32 %v1660, %v1664
    %v1667 = vlaneseq
    %v1668 = vshrl.u32 %v1667, 7
    %v1669 = vsub.s32 3, %v1668
    %v1670 = vrot.slane %v998, %v1669
    %v1671 = vadd.f32 %v1665, %v1670
    %v1672 = vadd.f32 %v1666, %v1670
    %v1673 = vpack.c.bf16 %v1672, %v1671
    %s1674 = scalar_lea.vmem %s9, 16
    %v1675 = vld [vmem:[%s1674] sm:$0xf]
    %v1676 = vld [vmem:[%s1674 + $0x4] sm:$0xf]
    %v1677 = vld [vmem:[%s1674 + $0x8] sm:$0xf]
    %v1678 = vld [vmem:[%s1674 + $0xc] sm:$0xf]
    %s1679 = scalar_lea.vmem %s10, 1
    %v1680 = vld [vmem:[%s1679] sm:$0x1]
    %v1682 = vlaneseq
    %v1683 = vshrl.u32 %v1682, 7
    %v1684 = vsub.s32 0, %v1683
    %v1685 = vrot.slane %v1680, %v1684
    %v1691 = vunpack.c.l.b16 %v1675
    %v1692 = vunpack.c.l.b16 %v1676
    %v1693 = vunpack.c.l.b16 %v1677
    %v1694 = vunpack.c.l.b16 %v1678
    %v1695 = vpack.c.b16 %v1692, %v1691
    %v1696 = vpack.c.b16 %v1694, %v1693
    %v1700 = vsel %vm121, %v1673, 0
    %1702 = vmatprep.subr.bf16.mxu0 0
    %1703 = vmatpush1.bf16.msra.mxu0 0
    %1704 = vmatprep.subr.bf16.mxu0 0
    %1705 = vmatpush1.bf16.msra.mxu0 0
    %1706 = vmatprep.subr.bf16.mxu0 0
    %1707 = vmatpush1.bf16.msra.mxu0 0
    %1708 = vmatprep.subr.bf16.mxu0 0
    %1709 = vmatpush1.bf16.msra.mxu0 0
    %1710 = vmatprep.subr.bf16.mxu0 0
    %1711 = vmatpush1.bf16.msra.mxu0 0
    %1712 = vmatprep.subr.bf16.mxu0 0
    %1713 = vmatpush1.bf16.msra.mxu0 0
    %1714 = vmatprep.subr.bf16.mxu0 0
    %1715 = vmatpush1.bf16.msra.mxu0 %v1696
    %1716 = vmatprep.subr.bf16.mxu0 0
    %1717 = vmatpush1.bf16.msra.mxu0 %v1695
    %1718 = vmatprep.subr.bf16.mxu0 0
    %1719 = vmatpush2.bf16.msra.mxu0 0
    %1720 = vmatprep.subr.bf16.mxu0 0
    %1721 = vmatpush2.bf16.msra.mxu0 0
    %1722 = vmatprep.subr.bf16.mxu0 0
    %1723 = vmatpush2.bf16.msra.mxu0 0
    %1724 = vmatprep.subr.bf16.mxu0 0
    %1725 = vmatpush2.bf16.msra.mxu0 0
    %1726 = vmatprep.subr.bf16.mxu0 0
    %1727 = vmatpush2.bf16.msra.mxu0 0
    %1728 = vmatprep.subr.bf16.mxu0 0
    %1729 = vmatpush2.bf16.msra.mxu0 0
    %1730 = vmatprep.subr.bf16.mxu0 0
    %1731 = vmatpush2.bf16.msra.mxu0 0
    %1732 = vmatprep.subr.bf16.mxu0 0
    %1733 = vmatpush2.bf16.msra.mxu0 0
    %1734 = vmatprep.mubr.bf16.mxu0 0
    %1735 = vmatmul.mubr.bf16.gmra.mxu0 %v1700
    %v1736 = vpop.f32.mrf.mxu0
    %v1737 = vadd.f32 %v1685, %v1736
    %v1738 = vpop.f32.mrf.mxu0
    %v1739 = vpop.f32.mrf.mxu0
    %v1740 = vadd.f32 %v1685, %v1739
    %v1741 = vpop.f32.mrf.mxu0
    %1742 = vdwg.mxu0
    %v1743 = vmul.f32 %v1737, 0.5
    %v1744 = vmul.f32 %v1740, 0.5
    %v1745 = vmul.f32 %v1737, 0.044715
    %v1746 = vmul.f32 %v1740, 0.044715
    %v1747 = vmul.f32 %v1745, %v1737
    %v1748 = vmul.f32 %v1746, %v1740
    %v1749 = vmul.f32 %v1747, %v1737
    %v1750 = vmul.f32 %v1748, %v1740
    %v1751 = vadd.f32 %v1737, %v1749
    %v1752 = vadd.f32 %v1740, %v1750
    %v1753 = vmul.f32 %v1751, 0.7978846
    %v1754 = vmul.f32 %v1752, 0.7978846
    %v1755 = vtanh.pop %v1753
    %v1756 = vtanh.pop %v1754
    %v1757 = vadd.f32 %v1755, 1.0
    %v1758 = vadd.f32 %v1756, 1.0
    %v1759 = vmul.f32 %v1743, %v1757
    %v1760 = vmul.f32 %v1744, %v1758
    %v1761 = vpack.c.bf16 %v1760, %v1759
    %s1762 = scalar_lea.vmem %s11, 64
    %v1763 = vld [vmem:[%s1762] sm:$0xf]
    %v1764 = vld [vmem:[%s1762 + $0x4] sm:$0xf]
    %v1765 = vld [vmem:[%s1762 + $0x8] sm:$0xf]
    %v1766 = vld [vmem:[%s1762 + $0xc] sm:$0xf]
    %v1767 = vld [vmem:[%s1762 + $0x10] sm:$0xf]
    %v1768 = vld [vmem:[%s1762 + $0x14] sm:$0xf]
    %v1769 = vld [vmem:[%s1762 + $0x18] sm:$0xf]
    %v1770 = vld [vmem:[%s1762 + $0x1c] sm:$0xf]
    %v1771 = vld [vmem:[%s1762 + $0x20] sm:$0xf]
    %v1772 = vld [vmem:[%s1762 + $0x24] sm:$0xf]
    %v1773 = vld [vmem:[%s1762 + $0x28] sm:$0xf]
    %v1774 = vld [vmem:[%s1762 + $0x2c] sm:$0xf]
    %v1775 = vld [vmem:[%s1762 + $0x30] sm:$0xf]
    %v1776 = vld [vmem:[%s1762 + $0x34] sm:$0xf]
    %v1777 = vld [vmem:[%s1762 + $0x38] sm:$0xf]
    %v1778 = vld [vmem:[%s1762 + $0x3c] sm:$0xf]
    %v1795 = vunpack.c.l.b16 %v1763
    %v1796 = vunpack.c.l.b16 %v1764
    %v1797 = vunpack.c.l.b16 %v1765
    %v1798 = vunpack.c.l.b16 %v1766
    %v1799 = vunpack.c.l.b16 %v1767
    %v1800 = vunpack.c.l.b16 %v1768
    %v1801 = vunpack.c.l.b16 %v1769
    %v1802 = vunpack.c.l.b16 %v1770
    %v1803 = vunpack.c.l.b16 %v1771
    %v1804 = vunpack.c.l.b16 %v1772
    %v1805 = vunpack.c.l.b16 %v1773
    %v1806 = vunpack.c.l.b16 %v1774
    %v1807 = vunpack.c.l.b16 %v1775
    %v1808 = vunpack.c.l.b16 %v1776
    %v1809 = vunpack.c.l.b16 %v1777
    %v1810 = vunpack.c.l.b16 %v1778
    %v1811 = vpack.c.b16 %v1796, %v1795
    %v1812 = vpack.c.b16 %v1798, %v1797
    %v1813 = vpack.c.b16 %v1800, %v1799
    %v1814 = vpack.c.b16 %v1802, %v1801
    %v1815 = vpack.c.b16 %v1804, %v1803
    %v1816 = vpack.c.b16 %v1806, %v1805
    %v1817 = vpack.c.b16 %v1808, %v1807
    %v1818 = vpack.c.b16 %v1810, %v1809
    %1827 = vmatprep.subr.bf16.mxu0 0
    %1828 = vmatpush1.bf16.msra.mxu0 %v1818
    %1829 = vmatprep.subr.bf16.mxu0 0
    %1830 = vmatpush1.bf16.msra.mxu0 %v1817
    %1831 = vmatprep.subr.bf16.mxu0 0
    %1832 = vmatpush1.bf16.msra.mxu0 %v1816
    %1833 = vmatprep.subr.bf16.mxu0 0
    %1834 = vmatpush1.bf16.msra.mxu0 %v1815
    %1835 = vmatprep.subr.bf16.mxu0 0
    %1836 = vmatpush1.bf16.msra.mxu0 %v1814
    %1837 = vmatprep.subr.bf16.mxu0 0
    %1838 = vmatpush1.bf16.msra.mxu0 %v1813
    %1839 = vmatprep.subr.bf16.mxu0 0
    %1840 = vmatpush1.bf16.msra.mxu0 %v1812
    %1841 = vmatprep.subr.bf16.mxu0 0
    %1842 = vmatpush1.bf16.msra.mxu0 %v1811
    %1843 = vmatprep.subr.bf16.mxu0 0
    %1844 = vmatpush2.bf16.msra.mxu0 0
    %1845 = vmatprep.subr.bf16.mxu0 0
    %1846 = vmatpush2.bf16.msra.mxu0 0
    %1847 = vmatprep.subr.bf16.mxu0 0
    %1848 = vmatpush2.bf16.msra.mxu0 0
    %1849 = vmatprep.subr.bf16.mxu0 0
    %1850 = vmatpush2.bf16.msra.mxu0 0
    %1851 = vmatprep.subr.bf16.mxu0 0
    %1852 = vmatpush2.bf16.msra.mxu0 0
    %1853 = vmatprep.subr.bf16.mxu0 0
    %1854 = vmatpush2.bf16.msra.mxu0 0
    %1855 = vmatprep.subr.bf16.mxu0 0
    %1856 = vmatpush2.bf16.msra.mxu0 0
    %1857 = vmatprep.subr.bf16.mxu0 0
    %1858 = vmatpush2.bf16.msra.mxu0 0
    %1859 = vmatprep.mubr.bf16.mxu0 0
    %1860 = vmatmul.mubr.bf16.gmra.mxu0 %v1761
    %v1861 = vpop.f32.mrf.mxu0
    %v1862 = vadd.f32 0.0, %v1861
    %v1863 = vpop.f32.mrf.mxu0
    %v1864 = vpop.f32.mrf.mxu0
    %v1865 = vadd.f32 0.0, %v1864
    %v1866 = vpop.f32.mrf.mxu0
    %1867 = vdwg.mxu0
    %v1868 = vadd.f32 %v1633, %v1862
    %v1869 = vadd.f32 %v1634, %v1865
    %v1870 = vlaneseq
    %v1871 = vshrl.u32 %v1870, 7
    %v1872 = vsub.s32 5, %v1871
    %v1873 = vrot.slane %v998, %v1872
    %v1874 = vadd.f32 %v1868, %v1873
    %v1875 = vadd.f32 %v1869, %v1873
    %v1876 = vld [vmem:[%s8] sm:$0x7]
    %v1877 = vsel %vm121, %v1874, 0.0
    %1878 = vadd.xlane.f32.xlu0 %v1877
    %v1879 = vpop.xlane.xlu0 %1878
    %v1880 = vsel %vm121, %v1875, 0.0
    %1881 = vadd.xlane.f32.xlu0 %v1880
    %v1882 = vpop.xlane.xlu0 %1881
    %v1883 = vmul.f32 %v1879, %v128
    %v1884 = vmul.f32 %v1882, %v128
    %v1885 = vsub.f32 %v1874, %v1883
    %v1886 = vsub.f32 %v1875, %v1884
    %v1887 = vmul.f32 %v1885, %v1885
    %v1888 = vmul.f32 %v1886, %v1886
    %v1889 = vsel %vm121, %v1887, 0.0
    %1890 = vadd.xlane.f32.xlu0 %v1889
    %v1891 = vpop.xlane.xlu0 %1890
    %v1892 = vsel %vm121, %v1888, 0.0
    %1893 = vadd.xlane.f32.xlu0 %v1892
    %v1894 = vpop.xlane.xlu0 %1893
    %v1895 = vmul.f32 %v1891, %v128
    %v1896 = vmul.f32 %v1894, %v128
    %v1897 = vadd.f32 %v1895, 1e-05
    %v1898 = vadd.f32 %v1896, 1e-05
    %v1899 = vrsqrt.pop %v1897
    %v1900 = vrsqrt.pop %v1898
    %v1901 = vmul.f32 %v1885, %v1899
    %v1902 = vmul.f32 %v1886, %v1900
    %v1903 = vlaneseq
    %v1904 = vshrl.u32 %v1903, 7
    %v1905 = vsub.s32 0, %v1904
    %v1906 = vrot.slane %v1876, %v1905
    %v1907 = vmul.f32 %v1901, %v1906
    %v1908 = vmul.f32 %v1902, %v1906
    %v1909 = vlaneseq
    %v1910 = vshrl.u32 %v1909, 7
    %v1911 = vsub.s32 1, %v1910
    %v1912 = vrot.slane %v1876, %v1911
    %v1913 = vadd.f32 %v1907, %v1912
    %v1914 = vadd.f32 %v1908, %v1912
    %v1915 = vsel %vm121, %v1913, 0.0
    %v1916 = vrot.slane %v1915, 4
    %v1917 = vadd.f32 %v1915, %v1916
    %v1918 = vrot.slane %v1917, 2
    %v1919 = vadd.f32 %v1917, %v1918
    %v1920 = vrot.slane %v1919, 1
    %v1921 = vadd.f32 %v1919, %v1920
    %v1922 = vsel %vm121, %v1914, 0.0
    %v1923 = vrot.slane %v1922, 4
    %v1924 = vadd.f32 %v1922, %v1923
    %v1925 = vrot.slane %v1924, 2
    %v1926 = vadd.f32 %v1924, %v1925
    %v1927 = vrot.slane %v1926, 1
    %v1928 = vadd.f32 %v1926, %v1927
    %v1929 = vrcp.pop 8.0
    %v1930 = vmul.f32 %v1921, %v1929
    %v1931 = vmul.f32 %v1928, %v1929
    %v1932 = vld [vmem:[%s1] sm:$0x1]
    %v1933 = vld [vmem:[%s1 + $0x1] sm:$0x1]
    %v1934 = vpack.c.bf16 %v1932, %v1932
    %v1935 = vpack.c.bf16 %v1933, %v1933
    %v1936 = vlaneseq
    %v1937 = vshrl.u32 %v1936, 7
    %v1938 = vsub.s32 2, %v1937
    %v1939 = vrot.slane %v1876, %v1938
    %v1942 = vunpack.c.l.b16 %v1934
    %v1943 = vunpack.c.l.b16 %v1935
    %v1944 = vrot.slane %v1943, 7
    %vm1945 = vcmask 1041409
    %v1946 = vsel %vm1945, %v1944, %v1942
    %v1947 = vpack.c.b16 %v1946, %v1946
    %v1949 = vsel %vm59, %v1947, 0
    %1951 = vmatprep.subr.bf16.mxu0 0
    %1952 = vmatpush1.bf16.msra.mxu0 0
    %1953 = vmatprep.subr.bf16.mxu0 0
    %1954 = vmatpush1.bf16.msra.mxu0 0
    %1955 = vmatprep.subr.bf16.mxu0 0
    %1956 = vmatpush1.bf16.msra.mxu0 0
    %1957 = vmatprep.subr.bf16.mxu0 0
    %1958 = vmatpush1.bf16.msra.mxu0 0
    %1959 = vmatprep.subr.bf16.mxu0 0
    %1960 = vmatpush1.bf16.msra.mxu0 0
    %1961 = vmatprep.subr.bf16.mxu0 0
    %1962 = vmatpush1.bf16.msra.mxu0 0
    %1963 = vmatprep.subr.bf16.mxu0 0
    %1964 = vmatpush1.bf16.msra.mxu0 0
    %1965 = vmatprep.subr.bf16.mxu0 0
    %1966 = vmatpush1.bf16.msra.mxu0 %v68
    %1967 = vmatprep.subr.bf16.mxu0 0
    %1968 = vmatpush2.bf16.msra.mxu0 0
    %1969 = vmatprep.subr.bf16.mxu0 0
    %1970 = vmatpush2.bf16.msra.mxu0 0
    %1971 = vmatprep.subr.bf16.mxu0 0
    %1972 = vmatpush2.bf16.msra.mxu0 0
    %1973 = vmatprep.subr.bf16.mxu0 0
    %1974 = vmatpush2.bf16.msra.mxu0 0
    %1975 = vmatprep.subr.bf16.mxu0 0
    %1976 = vmatpush2.bf16.msra.mxu0 0
    %1977 = vmatprep.subr.bf16.mxu0 0
    %1978 = vmatpush2.bf16.msra.mxu0 0
    %1979 = vmatprep.subr.bf16.mxu0 0
    %1980 = vmatpush2.bf16.msra.mxu0 0
    %1981 = vmatprep.subr.bf16.mxu0 0
    %1982 = vmatpush2.bf16.msra.mxu0 0
    %1983 = vmatprep.mubr.bf16.mxu0 0
    %1984 = vmatmul.mubr.bf16.gmra.mxu0 %v1949
    %v1985 = vpop.f32.mrf.mxu0
    %v1986 = vadd.f32 %v1939, %v1985
    %v1987 = vpop.f32.mrf.mxu0
    %v1988 = vpop.f32.mrf.mxu0
    %v1989 = vpop.f32.mrf.mxu0
    %1990 = vdwg.mxu0
    %v1992 = vrot.slane %v1986, 1
    %v1995 = vadd.f32 %v1930, %v1986
    %v1996 = vadd.f32 %v1931, %v1992
    %v1997 = vpack.c.bf16 %v1995, %v1995
    %v1998 = vpack.c.bf16 %v1996, %v1996
    %v1999 = vld [vmem:[%s12] sm:$0xf]
    %v2000 = vld [vmem:[%s12 + $0x4] sm:$0xf]
    %v2001 = vld [vmem:[%s12 + $0x8] sm:$0xf]
    %v2002 = vld [vmem:[%s12 + $0xc] sm:$0xf]
    %v2003 = vld [vmem:[%s13] sm:$0x1]
    %v2005 = vlaneseq
    %v2006 = vshrl.u32 %v2005, 7
    %v2007 = vsub.s32 0, %v2006
    %v2008 = vrot.slane %v2003, %v2007
    %v2012 = vunpack.c.l.b16 %v1997
    %v2013 = vunpack.c.l.b16 %v1998
    %v2014 = vrot.slane %v2013, 7
    %v2015 = vsel %vm1945, %v2014, %v2012
    %v2016 = vpack.c.b16 %v2015, %v2015
    %v2021 = vunpack.c.l.b16 %v1999
    %v2022 = vunpack.c.l.b16 %v2000
    %v2023 = vunpack.c.l.b16 %v2001
    %v2024 = vunpack.c.l.b16 %v2002
    %v2025 = vpack.c.b16 %v2022, %v2021
    %v2026 = vpack.c.b16 %v2024, %v2023
    %v2030 = vsel %vm121, %v2016, 0
    %2032 = vmatprep.subr.bf16.mxu0 0
    %2033 = vmatpush1.bf16.msra.mxu0 0
    %2034 = vmatprep.subr.bf16.mxu0 0
    %2035 = vmatpush1.bf16.msra.mxu0 0
    %2036 = vmatprep.subr.bf16.mxu0 0
    %2037 = vmatpush1.bf16.msra.mxu0 0
    %2038 = vmatprep.subr.bf16.mxu0 0
    %2039 = vmatpush1.bf16.msra.mxu0 0
    %2040 = vmatprep.subr.bf16.mxu0 0
    %2041 = vmatpush1.bf16.msra.mxu0 0
    %2042 = vmatprep.subr.bf16.mxu0 0
    %2043 = vmatpush1.bf16.msra.mxu0 0
    %2044 = vmatprep.subr.bf16.mxu0 0
    %2045 = vmatpush1.bf16.msra.mxu0 %v2026
    %2046 = vmatprep.subr.bf16.mxu0 0
    %2047 = vmatpush1.bf16.msra.mxu0 %v2025
    %2048 = vmatprep.subr.bf16.mxu0 0
    %2049 = vmatpush2.bf16.msra.mxu0 0
    %2050 = vmatprep.subr.bf16.mxu0 0
    %2051 = vmatpush2.bf16.msra.mxu0 0
    %2052 = vmatprep.subr.bf16.mxu0 0
    %2053 = vmatpush2.bf16.msra.mxu0 0
    %2054 = vmatprep.subr.bf16.mxu0 0
    %2055 = vmatpush2.bf16.msra.mxu0 0
    %2056 = vmatprep.subr.bf16.mxu0 0
    %2057 = vmatpush2.bf16.msra.mxu0 0
    %2058 = vmatprep.subr.bf16.mxu0 0
    %2059 = vmatpush2.bf16.msra.mxu0 0
    %2060 = vmatprep.subr.bf16.mxu0 0
    %2061 = vmatpush2.bf16.msra.mxu0 0
    %2062 = vmatprep.subr.bf16.mxu0 0
    %2063 = vmatpush2.bf16.msra.mxu0 0
    %2064 = vmatprep.mubr.bf16.mxu0 0
    %2065 = vmatmul.mubr.bf16.gmra.mxu0 %v2030
    %v2066 = vpop.f32.mrf.mxu0
    %v2067 = vadd.f32 %v2008, %v2066
    %v2068 = vpop.f32.mrf.mxu0
    %v2069 = vpop.f32.mrf.mxu0
    %v2070 = vpop.f32.mrf.mxu0
    %2071 = vdwg.mxu0
    %2072 = vst [vmem:[#allocation2] sm:$0x3] %v2067
    // Predicated region
    $region58: #{tpu_custom_call.1} parent=1 // pred_check
      _
    $region59: #{tpu_custom_call.1} parent=1 // pred_check_branch
      %2074 = sbr.rel (0) target = $region61
    $region60: #{tpu_custom_call.1} parent=1 // pred_region
      %s2076 = ssub.s32 32, 32
      %2077 = vsyncadd [#allocation3], %s2076
      %s2079 = sshll.u32 [#allocation2], 4
      %s2080 = int_to_ptr.vmem [resolvable:$true] %s2079
      %2082 = dma.vmem_to_hbm [thread:$0]  %s2080, 32, %s14, [#allocation3]
    $region61: #{tpu_custom_call.1} parent=1 // pred_fallthru
      _
    // Predicated region
    $region62: #{tpu_custom_call.1} parent=1 // pred_check
      _
    $region63: #{tpu_custom_call.1} parent=1 // pred_check_branch
      %2084 = sbr.rel (0) target = $region65
    $region64: #{tpu_custom_call.1} parent=1 // pred_region
      %2085 = dma.done [#allocation3], 32
    $region65: #{tpu_custom_call.1} parent=1 // pred_fallthru
      _
    %2086 = vsyncpa [#allocation3], 1

</llo_original>
